<compile_context>
chip_gen: v7x
topology: tpu7x:2x2x1
jax: 0.10.0
libtpu: 0.0.40
codegen_flags: <defaults>
</compile_context>

<pallas_src>
import functools

import numpy as np
import jax
import jax.numpy as jnp
from jax.experimental import pallas as pl
from jax.experimental.pallas import tpu as pltpu


def _residual_block_kernel(x_ref, w1_ref, w2_ref, g1_ref, b1_ref, g2_ref,
                           b2_ref, pix_ref, o_ref, *, C, H, W, d, eps, slope):
    """One grid step == one batch sample.

    x_ref  : (1, C, H*W)  input, spatially flattened (lane-dense)   (VMEM)
    w*_ref : (9, C, C)    conv weights, [tap, c_out, c_in]           (VMEM)
    g*/b*  : (C, 1)       InstanceNorm affine params                 (VMEM)
    pix_ref: (2, H*W)     (row, col) index of every flat pixel, int32
    o_ref  : (1, C, H*W)  output                                     (VMEM)
    """
    L = H * W
    xf = x_ref[0].astype(jnp.float32)                       # (C, L)
    row_idx = pix_ref[0:1, :]                                # (1, L) int32
    col_idx = pix_ref[1:2, :]                                # (1, L) int32

    # Precompute (once) the flat shift and validity mask of each of the 9
    # taps; reused by both convolutions.  Output pixel k = i*W + j needs
    # input pixel (i+du, j+dv)  <=>  flat index k + du*W + dv, valid iff
    # 0 <= i+du < H and 0 <= j+dv < W.
    shifts, masks = [], []
    for u in range(3):
        du = (u - 1) * d
        for v in range(3):
            dv = (v - 1) * d
            shifts.append(du * W + dv)
            conds = []
            if du > 0:
                conds.append(row_idx < (H - du))
            elif du < 0:
                conds.append(row_idx >= (-du))
            if dv > 0:
                conds.append(col_idx < (W - dv))
            elif dv < 0:
                conds.append(col_idx >= (-dv))
            m = None
            for c in conds:
                m = c if m is None else jnp.logical_and(m, c)
            masks.append(m)

    def conv3x3(act, w_ref):
        # act: (C_in, L) f32.  Per tap: XLU roll + boundary mask, then one
        # MXU matmul (C_out, C_in) @ (C_in, L) accumulated in f32.  Only one
        # tap value is live at a time (low vreg pressure).
        acc = None
        for t in range(9):
            sh = shifts[t]
            tap = act if sh == 0 else pltpu.roll(act, shift=(-sh) % L, axis=1)
            if masks[t] is not None:
                tap = jnp.where(masks[t], tap, 0.0)
            term = jnp.dot(w_ref[t], tap, preferred_element_type=jnp.float32)
            acc = term if acc is None else acc + term
        return acc                                           # (C_out, L) f32

    def inorm(y, g_ref, b_ref):
        # Vectorized InstanceNorm over all channels; affine folded to 1 FMA.
        m = jnp.mean(y, axis=1, keepdims=True)                # (C, 1)
        var = jnp.mean(jnp.square(y - m), axis=1, keepdims=True)
        s = g_ref[...] * jax.lax.rsqrt(var + eps)              # (C, 1)
        return y * s + (b_ref[...] - m * s)

    def lrelu(y):
        return jnp.maximum(y, slope * y)

    y = lrelu(inorm(conv3x3(xf, w1_ref), g1_ref, b1_ref))
    y = inorm(conv3x3(y, w2_ref), g2_ref, b2_ref)
    o_ref[0] = lrelu(xf + y).astype(o_ref.dtype)


def residual_block(x, w1, g1, b1, w2, g2, b2, *, dilation=1, groups=1,
                   eps=1e-5, slope=0.1):
    """Forward pass of ResidualBlock (NCHW, bias-free 3x3 convs)."""
    N, C, H, W = x.shape
    assert groups == 1, "only groups=1 (the module default) is supported"
    d = int(dilation)
    L = H * W
    assert w1.shape == (C, C, 3, 3) and w2.shape == (C, C, 3, 3)

    # Weights as (9, C_out, C_in) VMEM tiles: tap t = 3*kh + kw.
    w1_t = jnp.transpose(jnp.asarray(w1, jnp.float32), (2, 3, 0, 1)).reshape(9, C, C)
    w2_t = jnp.transpose(jnp.asarray(w2, jnp.float32), (2, 3, 0, 1)).reshape(9, C, C)
    g1c = jnp.asarray(g1, jnp.float32).reshape(C, 1)
    b1c = jnp.asarray(b1, jnp.float32).reshape(C, 1)
    g2c = jnp.asarray(g2, jnp.float32).reshape(C, 1)
    b2c = jnp.asarray(b2, jnp.float32).reshape(C, 1)

    # Host-precomputed (row, col) index of every flattened pixel (avoids
    # in-kernel integer div/mod when building the conv boundary masks).
    rows = np.repeat(np.arange(H, dtype=np.int32), W)
    cols = np.tile(np.arange(W, dtype=np.int32), H)
    pix = jnp.asarray(np.stack([rows, cols], axis=0))         # (2, L) int32

    # Free (contiguous) host-side reshape -> every in-kernel tile is (C, H*W)
    # lane-dense.
    x_flat = x.reshape(N, C, L)

    kernel = functools.partial(_residual_block_kernel, C=C, H=H, W=W, d=d,
                               eps=float(eps), slope=float(slope))

    itemsize = jnp.dtype(x.dtype).itemsize
    flops = N * (4 * C * C * 9 * L + 24 * C * L)           # 2 convs + pointwise
    bytes_accessed = (2 * N * C * L * itemsize              # x in + out
                      + 2 * 9 * C * C * 4 + 4 * C * 4 + 2 * L * 4)

    out_flat = pl.pallas_call(
        kernel,
        out_shape=jax.ShapeDtypeStruct((N, C, L), x.dtype),
        grid=(N,),
        in_specs=[
            pl.BlockSpec((1, C, L), lambda n: (n, 0, 0)),    # x (flattened)
            pl.BlockSpec((9, C, C), lambda n: (0, 0, 0)),    # conv1 weights
            pl.BlockSpec((9, C, C), lambda n: (0, 0, 0)),    # conv2 weights
            pl.BlockSpec((C, 1), lambda n: (0, 0)),          # norm1 gamma
            pl.BlockSpec((C, 1), lambda n: (0, 0)),          # norm1 beta
            pl.BlockSpec((C, 1), lambda n: (0, 0)),          # norm2 gamma
            pl.BlockSpec((C, 1), lambda n: (0, 0)),          # norm2 beta
            pl.BlockSpec((2, L), lambda n: (0, 0)),          # pixel row/col idx
        ],
        out_specs=pl.BlockSpec((1, C, L), lambda n: (n, 0, 0)),
        compiler_params=pltpu.CompilerParams(
            dimension_semantics=("parallel",)),              # megacore over N
        cost_estimate=pl.CostEstimate(flops=flops,
                                      transcendentals=N * 2 * C,
                                      bytes_accessed=bytes_accessed),
    )(x_flat, w1_t, w2_t, g1c, b1c, g2c, b2c, pix)
    return out_flat.reshape(N, C, H, W)


def _reference_residual_block(x, w1, g1, b1, w2, g2, b2, *, dilation=1,
                              eps=1e-5, slope=0.1):
    """Pure-JAX (XLA) reference mirroring the PyTorch module."""
    d = int(dilation)

    def conv(inp, w):
        return jax.lax.conv_general_dilated(
            inp, w, window_strides=(1, 1),
            padding=((d, d), (d, d)),
            rhs_dilation=(d, d),
            dimension_numbers=("NCHW", "OIHW", "NCHW"))

    def inorm(y, g, b):
        m = jnp.mean(y, axis=(2, 3), keepdims=True)
        v = jnp.mean(jnp.square(y - m), axis=(2, 3), keepdims=True)
        yn = (y - m) * jax.lax.rsqrt(v + eps)
        return yn * g.reshape(1, -1, 1, 1) + b.reshape(1, -1, 1, 1)

    def lrelu(y):
        return jnp.maximum(y, slope * y)

    y = lrelu(inorm(conv(x, w1), g1, b1))
    y = inorm(conv(y, w2), g2, b2)
    return lrelu(x + y)


if __name__ == "__main__":
    key = jax.random.PRNGKey(0)
    N, C, H, W = 2, 4, 16, 16
    dilation = 1

    ks = jax.random.split(key, 7)
    x = jax.random.normal(ks[0], (N, C, H, W), dtype=jnp.float32)
    w1 = 0.1 * jax.random.normal(ks[1], (C, C, 3, 3), dtype=jnp.float32)
    w2 = 0.1 * jax.random.normal(ks[2], (C, C, 3, 3), dtype=jnp.float32)
    g1 = 1.0 + 0.1 * jax.random.normal(ks[3], (C,), dtype=jnp.float32)
    b1 = 0.1 * jax.random.normal(ks[4], (C,), dtype=jnp.float32)
    g2 = 1.0 + 0.1 * jax.random.normal(ks[5], (C,), dtype=jnp.float32)
    b2 = 0.1 * jax.random.normal(ks[6], (C,), dtype=jnp.float32)

    out = residual_block(x, w1, g1, b1, w2, g2, b2, dilation=dilation)
    out = jax.block_until_ready(out)

    ref = _reference_residual_block(x, w1, g1, b1, w2, g2, b2,
                                    dilation=dilation)
    ref = jax.block_until_ready(ref)

    assert out.shape == x.shape
    assert jnp.allclose(out, ref, atol=1e-4, rtol=1e-4), \
        float(jnp.max(jnp.abs(out - ref)))

    print("KERNEL_OK")
</pallas_src>

<mosaic_0001>
module attributes {stable_mosaic.version = 11 : i64} {
  func.func @_residual_block_kernel(%arg0: i32, %arg1: memref<1x4x256xf32, #tpu.memory_space<vmem>>, %arg2: memref<9x4x4xf32, #tpu.memory_space<vmem>>, %arg3: memref<9x4x4xf32, #tpu.memory_space<vmem>>, %arg4: memref<4x1xf32, #tpu.memory_space<vmem>>, %arg5: memref<4x1xf32, #tpu.memory_space<vmem>>, %arg6: memref<4x1xf32, #tpu.memory_space<vmem>>, %arg7: memref<4x1xf32, #tpu.memory_space<vmem>>, %arg8: memref<2x256xi32, #tpu.memory_space<vmem>>, %arg9: memref<1x4x256xf32, #tpu.memory_space<vmem>>) attributes {dimension_semantics = [#tpu.dimension_semantics<parallel>], iteration_bounds = array<i64: 2>, scalar_prefetch = 0 : i64, scratch_operands = 0 : i64, tpu.core_type = #tpu.core_type<tc>, window_params = [{transform_indices = @transform_0, window_bounds = array<i64: 1, 4, 256>}, {pipeline_mode = #tpu.pipeline_mode<synchronous>, transform_indices = @transform_1, window_bounds = array<i64: 9, 4, 4>}, {pipeline_mode = #tpu.pipeline_mode<synchronous>, transform_indices = @transform_2, window_bounds = array<i64: 9, 4, 4>}, {pipeline_mode = #tpu.pipeline_mode<synchronous>, transform_indices = @transform_3, window_bounds = array<i64: 4, 1>}, {pipeline_mode = #tpu.pipeline_mode<synchronous>, transform_indices = @transform_4, window_bounds = array<i64: 4, 1>}, {pipeline_mode = #tpu.pipeline_mode<synchronous>, transform_indices = @transform_5, window_bounds = array<i64: 4, 1>}, {pipeline_mode = #tpu.pipeline_mode<synchronous>, transform_indices = @transform_6, window_bounds = array<i64: 4, 1>}, {pipeline_mode = #tpu.pipeline_mode<synchronous>, transform_indices = @transform_7, window_bounds = array<i64: 2, 256>}, {transform_indices = @transform_8, window_bounds = array<i64: 1, 4, 256>}]} {
    %c0 = arith.constant 0 : index
    %c0_0 = arith.constant 0 : index
    %c0_1 = arith.constant 0 : index
    %0 = vector.load %arg1[%c0, %c0_0, %c0_1] : memref<1x4x256xf32, #tpu.memory_space<vmem>>, vector<1x4x256xf32>
    %1 = vector.shape_cast %0 : vector<1x4x256xf32> to vector<4x256xf32>
    %c0_2 = arith.constant 0 : index
    %c0_3 = arith.constant 0 : index
    %2 = vector.load %arg8[%c0_2, %c0_3] : memref<2x256xi32, #tpu.memory_space<vmem>>, vector<1x256xi32>
    %c1 = arith.constant 1 : index
    %c0_4 = arith.constant 0 : index
    %3 = vector.load %arg8[%c1, %c0_4] : memref<2x256xi32, #tpu.memory_space<vmem>>, vector<1x256xi32>
    %c1_i32 = arith.constant 1 : i32
    %4 = vector.broadcast %c1_i32 : i32 to vector<1x256xi32>
    %5 = arith.cmpi sge, %2, %4 : vector<1x256xi32>
    %c1_i32_5 = arith.constant 1 : i32
    %6 = vector.broadcast %c1_i32_5 : i32 to vector<1x256xi32>
    %7 = arith.cmpi sge, %3, %6 : vector<1x256xi32>
    %8 = arith.andi %5, %7 : vector<1x256xi1>
    %c1_i32_6 = arith.constant 1 : i32
    %9 = vector.broadcast %c1_i32_6 : i32 to vector<1x256xi32>
    %10 = arith.cmpi sge, %2, %9 : vector<1x256xi32>
    %c1_i32_7 = arith.constant 1 : i32
    %11 = vector.broadcast %c1_i32_7 : i32 to vector<1x256xi32>
    %12 = arith.cmpi sge, %2, %11 : vector<1x256xi32>
    %c15_i32 = arith.constant 15 : i32
    %13 = vector.broadcast %c15_i32 : i32 to vector<1x256xi32>
    %14 = arith.cmpi slt, %3, %13 : vector<1x256xi32>
    %15 = arith.andi %12, %14 : vector<1x256xi1>
    %c1_i32_8 = arith.constant 1 : i32
    %16 = vector.broadcast %c1_i32_8 : i32 to vector<1x256xi32>
    %17 = arith.cmpi sge, %3, %16 : vector<1x256xi32>
    %c15_i32_9 = arith.constant 15 : i32
    %18 = vector.broadcast %c15_i32_9 : i32 to vector<1x256xi32>
    %19 = arith.cmpi slt, %3, %18 : vector<1x256xi32>
    %c15_i32_10 = arith.constant 15 : i32
    %20 = vector.broadcast %c15_i32_10 : i32 to vector<1x256xi32>
    %21 = arith.cmpi slt, %2, %20 : vector<1x256xi32>
    %c1_i32_11 = arith.constant 1 : i32
    %22 = vector.broadcast %c1_i32_11 : i32 to vector<1x256xi32>
    %23 = arith.cmpi sge, %3, %22 : vector<1x256xi32>
    %24 = arith.andi %21, %23 : vector<1x256xi1>
    %c15_i32_12 = arith.constant 15 : i32
    %25 = vector.broadcast %c15_i32_12 : i32 to vector<1x256xi32>
    %26 = arith.cmpi slt, %2, %25 : vector<1x256xi32>
    %c15_i32_13 = arith.constant 15 : i32
    %27 = vector.broadcast %c15_i32_13 : i32 to vector<1x256xi32>
    %28 = arith.cmpi slt, %2, %27 : vector<1x256xi32>
    %c15_i32_14 = arith.constant 15 : i32
    %29 = vector.broadcast %c15_i32_14 : i32 to vector<1x256xi32>
    %30 = arith.cmpi slt, %3, %29 : vector<1x256xi32>
    %31 = arith.andi %28, %30 : vector<1x256xi1>
    %c17_i32 = arith.constant 17 : i32
    %32 = tpu.dynamic_rotate %1 by %c17_i32 dim 1 : vector<4x256xf32>, i32 -> vector<4x256xf32>
    %cst = arith.constant 0.000000e+00 : f32
    %33 = vector.shape_cast %8 : vector<1x256xi1> to vector<1x256xi1>
    %34 = vector.broadcast %33 : vector<1x256xi1> to vector<4x256xi1>
    %35 = vector.broadcast %cst : f32 to vector<4x256xf32>
    %36 = arith.select %34, %32, %35 : vector<4x256xi1>, vector<4x256xf32>
    %c0_15 = arith.constant 0 : index
    %c0_16 = arith.constant 0 : index
    %c0_17 = arith.constant 0 : index
    %37 = vector.load %arg2[%c0_15, %c0_16, %c0_17] : memref<9x4x4xf32, #tpu.memory_space<vmem>>, vector<1x4x4xf32>
    %38 = vector.shape_cast %37 : vector<1x4x4xf32> to vector<4x4xf32>
    %cst_18 = arith.constant dense<0.000000e+00> : vector<4x256xf32>
    %39 = tpu.matmul %38, %36, %cst_18 {dimension_numbers = #tpu.dot_dimension_numbers<[1], [0], [0], [1], [0, 0, 1, 1], [], []>} : vector<4x4xf32>, vector<4x256xf32>, vector<4x256xf32> -> vector<4x256xf32>
    %c16_i32 = arith.constant 16 : i32
    %40 = tpu.dynamic_rotate %1 by %c16_i32 dim 1 : vector<4x256xf32>, i32 -> vector<4x256xf32>
    %cst_19 = arith.constant 0.000000e+00 : f32
    %41 = vector.shape_cast %10 : vector<1x256xi1> to vector<1x256xi1>
    %42 = vector.broadcast %41 : vector<1x256xi1> to vector<4x256xi1>
    %43 = vector.broadcast %cst_19 : f32 to vector<4x256xf32>
    %44 = arith.select %42, %40, %43 : vector<4x256xi1>, vector<4x256xf32>
    %c1_20 = arith.constant 1 : index
    %c0_21 = arith.constant 0 : index
    %c0_22 = arith.constant 0 : index
    %45 = vector.load %arg2[%c1_20, %c0_21, %c0_22] : memref<9x4x4xf32, #tpu.memory_space<vmem>>, vector<1x4x4xf32>
    %46 = vector.shape_cast %45 : vector<1x4x4xf32> to vector<4x4xf32>
    %cst_23 = arith.constant dense<0.000000e+00> : vector<4x256xf32>
    %47 = tpu.matmul %46, %44, %cst_23 {dimension_numbers = #tpu.dot_dimension_numbers<[1], [0], [0], [1], [0, 0, 1, 1], [], []>} : vector<4x4xf32>, vector<4x256xf32>, vector<4x256xf32> -> vector<4x256xf32>
    %48 = arith.addf %39, %47 : vector<4x256xf32>
    %c15_i32_24 = arith.constant 15 : i32
    %49 = tpu.dynamic_rotate %1 by %c15_i32_24 dim 1 : vector<4x256xf32>, i32 -> vector<4x256xf32>
    %cst_25 = arith.constant 0.000000e+00 : f32
    %50 = vector.shape_cast %15 : vector<1x256xi1> to vector<1x256xi1>
    %51 = vector.broadcast %50 : vector<1x256xi1> to vector<4x256xi1>
    %52 = vector.broadcast %cst_25 : f32 to vector<4x256xf32>
    %53 = arith.select %51, %49, %52 : vector<4x256xi1>, vector<4x256xf32>
    %c2 = arith.constant 2 : index
    %c0_26 = arith.constant 0 : index
    %c0_27 = arith.constant 0 : index
    %54 = vector.load %arg2[%c2, %c0_26, %c0_27] : memref<9x4x4xf32, #tpu.memory_space<vmem>>, vector<1x4x4xf32>
    %55 = vector.shape_cast %54 : vector<1x4x4xf32> to vector<4x4xf32>
    %cst_28 = arith.constant dense<0.000000e+00> : vector<4x256xf32>
    %56 = tpu.matmul %55, %53, %cst_28 {dimension_numbers = #tpu.dot_dimension_numbers<[1], [0], [0], [1], [0, 0, 1, 1], [], []>} : vector<4x4xf32>, vector<4x256xf32>, vector<4x256xf32> -> vector<4x256xf32>
    %57 = arith.addf %48, %56 : vector<4x256xf32>
    %c1_i32_29 = arith.constant 1 : i32
    %58 = tpu.dynamic_rotate %1 by %c1_i32_29 dim 1 : vector<4x256xf32>, i32 -> vector<4x256xf32>
    %cst_30 = arith.constant 0.000000e+00 : f32
    %59 = vector.shape_cast %17 : vector<1x256xi1> to vector<1x256xi1>
    %60 = vector.broadcast %59 : vector<1x256xi1> to vector<4x256xi1>
    %61 = vector.broadcast %cst_30 : f32 to vector<4x256xf32>
    %62 = arith.select %60, %58, %61 : vector<4x256xi1>, vector<4x256xf32>
    %c3 = arith.constant 3 : index
    %c0_31 = arith.constant 0 : index
    %c0_32 = arith.constant 0 : index
    %63 = vector.load %arg2[%c3, %c0_31, %c0_32] : memref<9x4x4xf32, #tpu.memory_space<vmem>>, vector<1x4x4xf32>
    %64 = vector.shape_cast %63 : vector<1x4x4xf32> to vector<4x4xf32>
    %cst_33 = arith.constant dense<0.000000e+00> : vector<4x256xf32>
    %65 = tpu.matmul %64, %62, %cst_33 {dimension_numbers = #tpu.dot_dimension_numbers<[1], [0], [0], [1], [0, 0, 1, 1], [], []>} : vector<4x4xf32>, vector<4x256xf32>, vector<4x256xf32> -> vector<4x256xf32>
    %66 = arith.addf %57, %65 : vector<4x256xf32>
    %c4 = arith.constant 4 : index
    %c0_34 = arith.constant 0 : index
    %c0_35 = arith.constant 0 : index
    %67 = vector.load %arg2[%c4, %c0_34, %c0_35] : memref<9x4x4xf32, #tpu.memory_space<vmem>>, vector<1x4x4xf32>
    %68 = vector.shape_cast %67 : vector<1x4x4xf32> to vector<4x4xf32>
    %cst_36 = arith.constant dense<0.000000e+00> : vector<4x256xf32>
    %69 = tpu.matmul %68, %1, %cst_36 {dimension_numbers = #tpu.dot_dimension_numbers<[1], [0], [0], [1], [0, 0, 1, 1], [], []>} : vector<4x4xf32>, vector<4x256xf32>, vector<4x256xf32> -> vector<4x256xf32>
    %70 = arith.addf %66, %69 : vector<4x256xf32>
    %c255_i32 = arith.constant 255 : i32
    %71 = tpu.dynamic_rotate %1 by %c255_i32 dim 1 : vector<4x256xf32>, i32 -> vector<4x256xf32>
    %cst_37 = arith.constant 0.000000e+00 : f32
    %72 = vector.shape_cast %19 : vector<1x256xi1> to vector<1x256xi1>
    %73 = vector.broadcast %72 : vector<1x256xi1> to vector<4x256xi1>
    %74 = vector.broadcast %cst_37 : f32 to vector<4x256xf32>
    %75 = arith.select %73, %71, %74 : vector<4x256xi1>, vector<4x256xf32>
    %c5 = arith.constant 5 : index
    %c0_38 = arith.constant 0 : index
    %c0_39 = arith.constant 0 : index
    %76 = vector.load %arg2[%c5, %c0_38, %c0_39] : memref<9x4x4xf32, #tpu.memory_space<vmem>>, vector<1x4x4xf32>
    %77 = vector.shape_cast %76 : vector<1x4x4xf32> to vector<4x4xf32>
    %cst_40 = arith.constant dense<0.000000e+00> : vector<4x256xf32>
    %78 = tpu.matmul %77, %75, %cst_40 {dimension_numbers = #tpu.dot_dimension_numbers<[1], [0], [0], [1], [0, 0, 1, 1], [], []>} : vector<4x4xf32>, vector<4x256xf32>, vector<4x256xf32> -> vector<4x256xf32>
    %79 = arith.addf %70, %78 : vector<4x256xf32>
    %c241_i32 = arith.constant 241 : i32
    %80 = tpu.dynamic_rotate %1 by %c241_i32 dim 1 : vector<4x256xf32>, i32 -> vector<4x256xf32>
    %cst_41 = arith.constant 0.000000e+00 : f32
    %81 = vector.shape_cast %24 : vector<1x256xi1> to vector<1x256xi1>
    %82 = vector.broadcast %81 : vector<1x256xi1> to vector<4x256xi1>
    %83 = vector.broadcast %cst_41 : f32 to vector<4x256xf32>
    %84 = arith.select %82, %80, %83 : vector<4x256xi1>, vector<4x256xf32>
    %c6 = arith.constant 6 : index
    %c0_42 = arith.constant 0 : index
    %c0_43 = arith.constant 0 : index
    %85 = vector.load %arg2[%c6, %c0_42, %c0_43] : memref<9x4x4xf32, #tpu.memory_space<vmem>>, vector<1x4x4xf32>
    %86 = vector.shape_cast %85 : vector<1x4x4xf32> to vector<4x4xf32>
    %cst_44 = arith.constant dense<0.000000e+00> : vector<4x256xf32>
    %87 = tpu.matmul %86, %84, %cst_44 {dimension_numbers = #tpu.dot_dimension_numbers<[1], [0], [0], [1], [0, 0, 1, 1], [], []>} : vector<4x4xf32>, vector<4x256xf32>, vector<4x256xf32> -> vector<4x256xf32>
    %88 = arith.addf %79, %87 : vector<4x256xf32>
    %c240_i32 = arith.constant 240 : i32
    %89 = tpu.dynamic_rotate %1 by %c240_i32 dim 1 : vector<4x256xf32>, i32 -> vector<4x256xf32>
    %cst_45 = arith.constant 0.000000e+00 : f32
    %90 = vector.shape_cast %26 : vector<1x256xi1> to vector<1x256xi1>
    %91 = vector.broadcast %90 : vector<1x256xi1> to vector<4x256xi1>
    %92 = vector.broadcast %cst_45 : f32 to vector<4x256xf32>
    %93 = arith.select %91, %89, %92 : vector<4x256xi1>, vector<4x256xf32>
    %c7 = arith.constant 7 : index
    %c0_46 = arith.constant 0 : index
    %c0_47 = arith.constant 0 : index
    %94 = vector.load %arg2[%c7, %c0_46, %c0_47] : memref<9x4x4xf32, #tpu.memory_space<vmem>>, vector<1x4x4xf32>
    %95 = vector.shape_cast %94 : vector<1x4x4xf32> to vector<4x4xf32>
    %cst_48 = arith.constant dense<0.000000e+00> : vector<4x256xf32>
    %96 = tpu.matmul %95, %93, %cst_48 {dimension_numbers = #tpu.dot_dimension_numbers<[1], [0], [0], [1], [0, 0, 1, 1], [], []>} : vector<4x4xf32>, vector<4x256xf32>, vector<4x256xf32> -> vector<4x256xf32>
    %97 = arith.addf %88, %96 : vector<4x256xf32>
    %c239_i32 = arith.constant 239 : i32
    %98 = tpu.dynamic_rotate %1 by %c239_i32 dim 1 : vector<4x256xf32>, i32 -> vector<4x256xf32>
    %cst_49 = arith.constant 0.000000e+00 : f32
    %99 = vector.shape_cast %31 : vector<1x256xi1> to vector<1x256xi1>
    %100 = vector.broadcast %99 : vector<1x256xi1> to vector<4x256xi1>
    %101 = vector.broadcast %cst_49 : f32 to vector<4x256xf32>
    %102 = arith.select %100, %98, %101 : vector<4x256xi1>, vector<4x256xf32>
    %c8 = arith.constant 8 : index
    %c0_50 = arith.constant 0 : index
    %c0_51 = arith.constant 0 : index
    %103 = vector.load %arg2[%c8, %c0_50, %c0_51] : memref<9x4x4xf32, #tpu.memory_space<vmem>>, vector<1x4x4xf32>
    %104 = vector.shape_cast %103 : vector<1x4x4xf32> to vector<4x4xf32>
    %cst_52 = arith.constant dense<0.000000e+00> : vector<4x256xf32>
    %105 = tpu.matmul %104, %102, %cst_52 {dimension_numbers = #tpu.dot_dimension_numbers<[1], [0], [0], [1], [0, 0, 1, 1], [], []>} : vector<4x4xf32>, vector<4x256xf32>, vector<4x256xf32> -> vector<4x256xf32>
    %106 = arith.addf %97, %105 : vector<4x256xf32>
    %cst_53 = arith.constant dense<0.000000e+00> : vector<4xf32>
    %107 = vector.multi_reduction <add>, %106, %cst_53 [1] : vector<4x256xf32> to vector<4xf32>
    %108 = vector.shape_cast %107 : vector<4xf32> to vector<4x1xf32>
    %cst_54 = arith.constant 2.560000e+02 : f32
    %109 = vector.broadcast %cst_54 : f32 to vector<4x1xf32>
    %110 = arith.divf %108, %109 : vector<4x1xf32>
    %111 = vector.broadcast %110 : vector<4x1xf32> to vector<4x256xf32>
    %112 = arith.subf %106, %111 : vector<4x256xf32>
    %113 = arith.mulf %112, %112 : vector<4x256xf32>
    %cst_55 = arith.constant dense<0.000000e+00> : vector<4xf32>
    %114 = vector.multi_reduction <add>, %113, %cst_55 [1] : vector<4x256xf32> to vector<4xf32>
    %115 = vector.shape_cast %114 : vector<4xf32> to vector<4x1xf32>
    %cst_56 = arith.constant 2.560000e+02 : f32
    %116 = vector.broadcast %cst_56 : f32 to vector<4x1xf32>
    %117 = arith.divf %115, %116 : vector<4x1xf32>
    %c0_57 = arith.constant 0 : index
    %c0_58 = arith.constant 0 : index
    %118 = vector.load %arg4[%c0_57, %c0_58] : memref<4x1xf32, #tpu.memory_space<vmem>>, vector<4x1xf32>
    %cst_59 = arith.constant 9.99999974E-6 : f32
    %119 = vector.broadcast %cst_59 : f32 to vector<4x1xf32>
    %120 = arith.addf %117, %119 : vector<4x1xf32>
    %121 = math.rsqrt %120 : vector<4x1xf32>
    %122 = arith.mulf %118, %121 : vector<4x1xf32>
    %123 = vector.broadcast %122 : vector<4x1xf32> to vector<4x256xf32>
    %124 = arith.mulf %106, %123 : vector<4x256xf32>
    %c0_60 = arith.constant 0 : index
    %c0_61 = arith.constant 0 : index
    %125 = vector.load %arg5[%c0_60, %c0_61] : memref<4x1xf32, #tpu.memory_space<vmem>>, vector<4x1xf32>
    %126 = arith.mulf %110, %122 : vector<4x1xf32>
    %127 = arith.subf %125, %126 : vector<4x1xf32>
    %128 = vector.broadcast %127 : vector<4x1xf32> to vector<4x256xf32>
    %129 = arith.addf %124, %128 : vector<4x256xf32>
    %cst_62 = arith.constant 1.000000e-01 : f32
    %130 = vector.broadcast %cst_62 : f32 to vector<4x256xf32>
    %131 = arith.mulf %130, %129 : vector<4x256xf32>
    %132 = arith.maximumf %129, %131 : vector<4x256xf32>
    %c17_i32_63 = arith.constant 17 : i32
    %133 = tpu.dynamic_rotate %132 by %c17_i32_63 dim 1 : vector<4x256xf32>, i32 -> vector<4x256xf32>
    %cst_64 = arith.constant 0.000000e+00 : f32
    %134 = vector.shape_cast %8 : vector<1x256xi1> to vector<1x256xi1>
    %135 = vector.broadcast %134 : vector<1x256xi1> to vector<4x256xi1>
    %136 = vector.broadcast %cst_64 : f32 to vector<4x256xf32>
    %137 = arith.select %135, %133, %136 : vector<4x256xi1>, vector<4x256xf32>
    %c0_65 = arith.constant 0 : index
    %c0_66 = arith.constant 0 : index
    %c0_67 = arith.constant 0 : index
    %138 = vector.load %arg3[%c0_65, %c0_66, %c0_67] : memref<9x4x4xf32, #tpu.memory_space<vmem>>, vector<1x4x4xf32>
    %139 = vector.shape_cast %138 : vector<1x4x4xf32> to vector<4x4xf32>
    %cst_68 = arith.constant dense<0.000000e+00> : vector<4x256xf32>
    %140 = tpu.matmul %139, %137, %cst_68 {dimension_numbers = #tpu.dot_dimension_numbers<[1], [0], [0], [1], [0, 0, 1, 1], [], []>} : vector<4x4xf32>, vector<4x256xf32>, vector<4x256xf32> -> vector<4x256xf32>
    %c16_i32_69 = arith.constant 16 : i32
    %141 = tpu.dynamic_rotate %132 by %c16_i32_69 dim 1 : vector<4x256xf32>, i32 -> vector<4x256xf32>
    %cst_70 = arith.constant 0.000000e+00 : f32
    %142 = vector.shape_cast %10 : vector<1x256xi1> to vector<1x256xi1>
    %143 = vector.broadcast %142 : vector<1x256xi1> to vector<4x256xi1>
    %144 = vector.broadcast %cst_70 : f32 to vector<4x256xf32>
    %145 = arith.select %143, %141, %144 : vector<4x256xi1>, vector<4x256xf32>
    %c1_71 = arith.constant 1 : index
    %c0_72 = arith.constant 0 : index
    %c0_73 = arith.constant 0 : index
    %146 = vector.load %arg3[%c1_71, %c0_72, %c0_73] : memref<9x4x4xf32, #tpu.memory_space<vmem>>, vector<1x4x4xf32>
    %147 = vector.shape_cast %146 : vector<1x4x4xf32> to vector<4x4xf32>
    %cst_74 = arith.constant dense<0.000000e+00> : vector<4x256xf32>
    %148 = tpu.matmul %147, %145, %cst_74 {dimension_numbers = #tpu.dot_dimension_numbers<[1], [0], [0], [1], [0, 0, 1, 1], [], []>} : vector<4x4xf32>, vector<4x256xf32>, vector<4x256xf32> -> vector<4x256xf32>
    %149 = arith.addf %140, %148 : vector<4x256xf32>
    %c15_i32_75 = arith.constant 15 : i32
    %150 = tpu.dynamic_rotate %132 by %c15_i32_75 dim 1 : vector<4x256xf32>, i32 -> vector<4x256xf32>
    %cst_76 = arith.constant 0.000000e+00 : f32
    %151 = vector.shape_cast %15 : vector<1x256xi1> to vector<1x256xi1>
    %152 = vector.broadcast %151 : vector<1x256xi1> to vector<4x256xi1>
    %153 = vector.broadcast %cst_76 : f32 to vector<4x256xf32>
    %154 = arith.select %152, %150, %153 : vector<4x256xi1>, vector<4x256xf32>
    %c2_77 = arith.constant 2 : index
    %c0_78 = arith.constant 0 : index
    %c0_79 = arith.constant 0 : index
    %155 = vector.load %arg3[%c2_77, %c0_78, %c0_79] : memref<9x4x4xf32, #tpu.memory_space<vmem>>, vector<1x4x4xf32>
    %156 = vector.shape_cast %155 : vector<1x4x4xf32> to vector<4x4xf32>
    %cst_80 = arith.constant dense<0.000000e+00> : vector<4x256xf32>
    %157 = tpu.matmul %156, %154, %cst_80 {dimension_numbers = #tpu.dot_dimension_numbers<[1], [0], [0], [1], [0, 0, 1, 1], [], []>} : vector<4x4xf32>, vector<4x256xf32>, vector<4x256xf32> -> vector<4x256xf32>
    %158 = arith.addf %149, %157 : vector<4x256xf32>
    %c1_i32_81 = arith.constant 1 : i32
    %159 = tpu.dynamic_rotate %132 by %c1_i32_81 dim 1 : vector<4x256xf32>, i32 -> vector<4x256xf32>
    %cst_82 = arith.constant 0.000000e+00 : f32
    %160 = vector.shape_cast %17 : vector<1x256xi1> to vector<1x256xi1>
    %161 = vector.broadcast %160 : vector<1x256xi1> to vector<4x256xi1>
    %162 = vector.broadcast %cst_82 : f32 to vector<4x256xf32>
    %163 = arith.select %161, %159, %162 : vector<4x256xi1>, vector<4x256xf32>
    %c3_83 = arith.constant 3 : index
    %c0_84 = arith.constant 0 : index
    %c0_85 = arith.constant 0 : index
    %164 = vector.load %arg3[%c3_83, %c0_84, %c0_85] : memref<9x4x4xf32, #tpu.memory_space<vmem>>, vector<1x4x4xf32>
    %165 = vector.shape_cast %164 : vector<1x4x4xf32> to vector<4x4xf32>
    %cst_86 = arith.constant dense<0.000000e+00> : vector<4x256xf32>
    %166 = tpu.matmul %165, %163, %cst_86 {dimension_numbers = #tpu.dot_dimension_numbers<[1], [0], [0], [1], [0, 0, 1, 1], [], []>} : vector<4x4xf32>, vector<4x256xf32>, vector<4x256xf32> -> vector<4x256xf32>
    %167 = arith.addf %158, %166 : vector<4x256xf32>
    %c4_87 = arith.constant 4 : index
    %c0_88 = arith.constant 0 : index
    %c0_89 = arith.constant 0 : index
    %168 = vector.load %arg3[%c4_87, %c0_88, %c0_89] : memref<9x4x4xf32, #tpu.memory_space<vmem>>, vector<1x4x4xf32>
    %169 = vector.shape_cast %168 : vector<1x4x4xf32> to vector<4x4xf32>
    %cst_90 = arith.constant dense<0.000000e+00> : vector<4x256xf32>
    %170 = tpu.matmul %169, %132, %cst_90 {dimension_numbers = #tpu.dot_dimension_numbers<[1], [0], [0], [1], [0, 0, 1, 1], [], []>} : vector<4x4xf32>, vector<4x256xf32>, vector<4x256xf32> -> vector<4x256xf32>
    %171 = arith.addf %167, %170 : vector<4x256xf32>
    %c255_i32_91 = arith.constant 255 : i32
    %172 = tpu.dynamic_rotate %132 by %c255_i32_91 dim 1 : vector<4x256xf32>, i32 -> vector<4x256xf32>
    %cst_92 = arith.constant 0.000000e+00 : f32
    %173 = vector.shape_cast %19 : vector<1x256xi1> to vector<1x256xi1>
    %174 = vector.broadcast %173 : vector<1x256xi1> to vector<4x256xi1>
    %175 = vector.broadcast %cst_92 : f32 to vector<4x256xf32>
    %176 = arith.select %174, %172, %175 : vector<4x256xi1>, vector<4x256xf32>
    %c5_93 = arith.constant 5 : index
    %c0_94 = arith.constant 0 : index
    %c0_95 = arith.constant 0 : index
    %177 = vector.load %arg3[%c5_93, %c0_94, %c0_95] : memref<9x4x4xf32, #tpu.memory_space<vmem>>, vector<1x4x4xf32>
    %178 = vector.shape_cast %177 : vector<1x4x4xf32> to vector<4x4xf32>
    %cst_96 = arith.constant dense<0.000000e+00> : vector<4x256xf32>
    %179 = tpu.matmul %178, %176, %cst_96 {dimension_numbers = #tpu.dot_dimension_numbers<[1], [0], [0], [1], [0, 0, 1, 1], [], []>} : vector<4x4xf32>, vector<4x256xf32>, vector<4x256xf32> -> vector<4x256xf32>
    %180 = arith.addf %171, %179 : vector<4x256xf32>
    %c241_i32_97 = arith.constant 241 : i32
    %181 = tpu.dynamic_rotate %132 by %c241_i32_97 dim 1 : vector<4x256xf32>, i32 -> vector<4x256xf32>
    %cst_98 = arith.constant 0.000000e+00 : f32
    %182 = vector.shape_cast %24 : vector<1x256xi1> to vector<1x256xi1>
    %183 = vector.broadcast %182 : vector<1x256xi1> to vector<4x256xi1>
    %184 = vector.broadcast %cst_98 : f32 to vector<4x256xf32>
    %185 = arith.select %183, %181, %184 : vector<4x256xi1>, vector<4x256xf32>
    %c6_99 = arith.constant 6 : index
    %c0_100 = arith.constant 0 : index
    %c0_101 = arith.constant 0 : index
    %186 = vector.load %arg3[%c6_99, %c0_100, %c0_101] : memref<9x4x4xf32, #tpu.memory_space<vmem>>, vector<1x4x4xf32>
    %187 = vector.shape_cast %186 : vector<1x4x4xf32> to vector<4x4xf32>
    %cst_102 = arith.constant dense<0.000000e+00> : vector<4x256xf32>
    %188 = tpu.matmul %187, %185, %cst_102 {dimension_numbers = #tpu.dot_dimension_numbers<[1], [0], [0], [1], [0, 0, 1, 1], [], []>} : vector<4x4xf32>, vector<4x256xf32>, vector<4x256xf32> -> vector<4x256xf32>
    %189 = arith.addf %180, %188 : vector<4x256xf32>
    %c240_i32_103 = arith.constant 240 : i32
    %190 = tpu.dynamic_rotate %132 by %c240_i32_103 dim 1 : vector<4x256xf32>, i32 -> vector<4x256xf32>
    %cst_104 = arith.constant 0.000000e+00 : f32
    %191 = vector.shape_cast %26 : vector<1x256xi1> to vector<1x256xi1>
    %192 = vector.broadcast %191 : vector<1x256xi1> to vector<4x256xi1>
    %193 = vector.broadcast %cst_104 : f32 to vector<4x256xf32>
    %194 = arith.select %192, %190, %193 : vector<4x256xi1>, vector<4x256xf32>
    %c7_105 = arith.constant 7 : index
    %c0_106 = arith.constant 0 : index
    %c0_107 = arith.constant 0 : index
    %195 = vector.load %arg3[%c7_105, %c0_106, %c0_107] : memref<9x4x4xf32, #tpu.memory_space<vmem>>, vector<1x4x4xf32>
    %196 = vector.shape_cast %195 : vector<1x4x4xf32> to vector<4x4xf32>
    %cst_108 = arith.constant dense<0.000000e+00> : vector<4x256xf32>
    %197 = tpu.matmul %196, %194, %cst_108 {dimension_numbers = #tpu.dot_dimension_numbers<[1], [0], [0], [1], [0, 0, 1, 1], [], []>} : vector<4x4xf32>, vector<4x256xf32>, vector<4x256xf32> -> vector<4x256xf32>
    %198 = arith.addf %189, %197 : vector<4x256xf32>
    %c239_i32_109 = arith.constant 239 : i32
    %199 = tpu.dynamic_rotate %132 by %c239_i32_109 dim 1 : vector<4x256xf32>, i32 -> vector<4x256xf32>
    %cst_110 = arith.constant 0.000000e+00 : f32
    %200 = vector.shape_cast %31 : vector<1x256xi1> to vector<1x256xi1>
    %201 = vector.broadcast %200 : vector<1x256xi1> to vector<4x256xi1>
    %202 = vector.broadcast %cst_110 : f32 to vector<4x256xf32>
    %203 = arith.select %201, %199, %202 : vector<4x256xi1>, vector<4x256xf32>
    %c8_111 = arith.constant 8 : index
    %c0_112 = arith.constant 0 : index
    %c0_113 = arith.constant 0 : index
    %204 = vector.load %arg3[%c8_111, %c0_112, %c0_113] : memref<9x4x4xf32, #tpu.memory_space<vmem>>, vector<1x4x4xf32>
    %205 = vector.shape_cast %204 : vector<1x4x4xf32> to vector<4x4xf32>
    %cst_114 = arith.constant dense<0.000000e+00> : vector<4x256xf32>
    %206 = tpu.matmul %205, %203, %cst_114 {dimension_numbers = #tpu.dot_dimension_numbers<[1], [0], [0], [1], [0, 0, 1, 1], [], []>} : vector<4x4xf32>, vector<4x256xf32>, vector<4x256xf32> -> vector<4x256xf32>
    %207 = arith.addf %198, %206 : vector<4x256xf32>
    %cst_115 = arith.constant dense<0.000000e+00> : vector<4xf32>
    %208 = vector.multi_reduction <add>, %207, %cst_115 [1] : vector<4x256xf32> to vector<4xf32>
    %209 = vector.shape_cast %208 : vector<4xf32> to vector<4x1xf32>
    %cst_116 = arith.constant 2.560000e+02 : f32
    %210 = vector.broadcast %cst_116 : f32 to vector<4x1xf32>
    %211 = arith.divf %209, %210 : vector<4x1xf32>
    %212 = vector.broadcast %211 : vector<4x1xf32> to vector<4x256xf32>
    %213 = arith.subf %207, %212 : vector<4x256xf32>
    %214 = arith.mulf %213, %213 : vector<4x256xf32>
    %cst_117 = arith.constant dense<0.000000e+00> : vector<4xf32>
    %215 = vector.multi_reduction <add>, %214, %cst_117 [1] : vector<4x256xf32> to vector<4xf32>
    %216 = vector.shape_cast %215 : vector<4xf32> to vector<4x1xf32>
    %cst_118 = arith.constant 2.560000e+02 : f32
    %217 = vector.broadcast %cst_118 : f32 to vector<4x1xf32>
    %218 = arith.divf %216, %217 : vector<4x1xf32>
    %c0_119 = arith.constant 0 : index
    %c0_120 = arith.constant 0 : index
    %219 = vector.load %arg6[%c0_119, %c0_120] : memref<4x1xf32, #tpu.memory_space<vmem>>, vector<4x1xf32>
    %cst_121 = arith.constant 9.99999974E-6 : f32
    %220 = vector.broadcast %cst_121 : f32 to vector<4x1xf32>
    %221 = arith.addf %218, %220 : vector<4x1xf32>
    %222 = math.rsqrt %221 : vector<4x1xf32>
    %223 = arith.mulf %219, %222 : vector<4x1xf32>
    %224 = vector.broadcast %223 : vector<4x1xf32> to vector<4x256xf32>
    %225 = arith.mulf %207, %224 : vector<4x256xf32>
    %c0_122 = arith.constant 0 : index
    %c0_123 = arith.constant 0 : index
    %226 = vector.load %arg7[%c0_122, %c0_123] : memref<4x1xf32, #tpu.memory_space<vmem>>, vector<4x1xf32>
    %227 = arith.mulf %211, %223 : vector<4x1xf32>
    %228 = arith.subf %226, %227 : vector<4x1xf32>
    %229 = vector.broadcast %228 : vector<4x1xf32> to vector<4x256xf32>
    %230 = arith.addf %225, %229 : vector<4x256xf32>
    %231 = arith.addf %1, %230 : vector<4x256xf32>
    %cst_124 = arith.constant 1.000000e-01 : f32
    %232 = vector.broadcast %cst_124 : f32 to vector<4x256xf32>
    %233 = arith.mulf %232, %231 : vector<4x256xf32>
    %234 = arith.maximumf %231, %233 : vector<4x256xf32>
    %c0_125 = arith.constant 0 : index
    %c0_126 = arith.constant 0 : index
    %c0_127 = arith.constant 0 : index
    %235 = vector.load %arg9[%c0_125, %c0_126, %c0_127] : memref<1x4x256xf32, #tpu.memory_space<vmem>>, vector<1x4x256xf32>
    %236 = vector.shape_cast %235 : vector<1x4x256xf32> to vector<4x256xf32>
    %237 = vector.shape_cast %234 : vector<4x256xf32> to vector<1x4x256xf32>
    tpu.vector_store %arg9[%c0_125, %c0_126, %c0_127], %237 {strides = array<i32>} : memref<1x4x256xf32, #tpu.memory_space<vmem>>, vector<1x4x256xf32>,
    return
  }
  func.func @transform_0(%arg0: i32) -> (i32, i32, i32) {
    %c0_i32 = arith.constant 0 : i32
    %c0_i32_0 = arith.constant 0 : i32
    %c0_i32_1 = arith.constant 0 : i32
    return %arg0, %c0_i32, %c0_i32_0 : i32, i32, i32
  }
  func.func @transform_1(%arg0: i32) -> (i32, i32, i32) {
    %c0_i32 = arith.constant 0 : i32
    %c0_i32_0 = arith.constant 0 : i32
    %c0_i32_1 = arith.constant 0 : i32
    %c0_i32_2 = arith.constant 0 : i32
    return %c0_i32, %c0_i32_0, %c0_i32_1 : i32, i32, i32
  }
  func.func @transform_2(%arg0: i32) -> (i32, i32, i32) {
    %c0_i32 = arith.constant 0 : i32
    %c0_i32_0 = arith.constant 0 : i32
    %c0_i32_1 = arith.constant 0 : i32
    %c0_i32_2 = arith.constant 0 : i32
    return %c0_i32, %c0_i32_0, %c0_i32_1 : i32, i32, i32
  }
  func.func @transform_3(%arg0: i32) -> (i32, i32) {
    %c0_i32 = arith.constant 0 : i32
    %c0_i32_0 = arith.constant 0 : i32
    %c0_i32_1 = arith.constant 0 : i32
    return %c0_i32, %c0_i32_0 : i32, i32
  }
  func.func @transform_4(%arg0: i32) -> (i32, i32) {
    %c0_i32 = arith.constant 0 : i32
    %c0_i32_0 = arith.constant 0 : i32
    %c0_i32_1 = arith.constant 0 : i32
    return %c0_i32, %c0_i32_0 : i32, i32
  }
  func.func @transform_5(%arg0: i32) -> (i32, i32) {
    %c0_i32 = arith.constant 0 : i32
    %c0_i32_0 = arith.constant 0 : i32
    %c0_i32_1 = arith.constant 0 : i32
    return %c0_i32, %c0_i32_0 : i32, i32
  }
  func.func @transform_6(%arg0: i32) -> (i32, i32) {
    %c0_i32 = arith.constant 0 : i32
    %c0_i32_0 = arith.constant 0 : i32
    %c0_i32_1 = arith.constant 0 : i32
    return %c0_i32, %c0_i32_0 : i32, i32
  }
  func.func @transform_7(%arg0: i32) -> (i32, i32) {
    %c0_i32 = arith.constant 0 : i32
    %c0_i32_0 = arith.constant 0 : i32
    %c0_i32_1 = arith.constant 0 : i32
    return %c0_i32, %c0_i32_0 : i32, i32
  }
  func.func @transform_8(%arg0: i32) -> (i32, i32, i32) {
    %c0_i32 = arith.constant 0 : i32
    %c0_i32_0 = arith.constant 0 : i32
    %c0_i32_1 = arith.constant 0 : i32
    return %arg0, %c0_i32, %c0_i32_0 : i32, i32, i32
  }
}

</mosaic_0001>

<llo_original>
// kernel: tpu_custom_call.1
$region0: #{tpu_custom_call.1}
  #allocation0 [shape = 'u32[]', space=smem, size = 0x4, offset = 0x4, fixed_abs, tag = 'smem constant byte address 0x4 - core index']
  #allocation1 [shape = 'u32[144,128]{1,0:T(1,128)}', space=vmem, size = 0x12000, scoped, tag = 'internal scratch']
  %s0 = inlined_call_operand.vmem [shape: f32[2,4,256], index: 0, kind: input, shape index: {}]
  %s1 = inlined_call_operand.vmem [shape: f32[9,4,4], index: 1, kind: input, shape index: {}]
  %s2 = inlined_call_operand.vmem [shape: f32[9,4,4], index: 2, kind: input, shape index: {}]
  %s3 = inlined_call_operand.vmem [shape: f32[4,1], index: 3, kind: input, shape index: {}]
  %s4 = inlined_call_operand.vmem [shape: f32[4,1], index: 4, kind: input, shape index: {}]
  %s5 = inlined_call_operand.vmem [shape: f32[4,1], index: 5, kind: input, shape index: {}]
  %s6 = inlined_call_operand.vmem [shape: f32[4,1], index: 6, kind: input, shape index: {}]
  %s7 = inlined_call_operand.vmem [shape: s32[2,256], index: 7, kind: input, shape index: {}]
  %s8 = inlined_call_operand.hbm [shape: f32[2,4,256], index: 8, kind: output, shape index: {}]
  %s9 = sld [smem:[#allocation0]]
  $region65: #{tpu_custom_call.1} parent=0
    _
  %s11 = ssub.s32 1, %s9
  %s12 = scalar_select 0, %s11, %s9
  $region1: #{tpu_custom_call.1} parent=0
    #allocation2 [shape = 'u8[8192]{0}', space=vmem, size = 0x2000, scoped, tag = 'output window, operand 0']
    #allocation3 [shape = 's32[2]{0}', space=sflag, size = 0x8, scoped, tag = 'scoped memory for tpu_custom_call.1']
    %13 = vsyncpa [#allocation3], 0
    %s14 = scalar_lea.sflag [#allocation3], 1
    %15 = vsyncpa %s14, 0
    loop: start=0, step=1, limit=4
    $region2: #{tpu_custom_call.1} parent=1 // loop_pre_header
      _
    $region3: #{tpu_custom_call.1} parent=1 // loop_header
      %s17 = sphi 0, %s21
      %p18 = scmp.ge.s32.totalorder %s17, 4
      %s27 = sphi 0, %s29
      %s30 = sphi 0, %s27
      %s31 = sphi 0, %s30
      %s47 = sphi 0, %s31
      %s51 = sphi 0, %s51
      %s53 = sphi 0, %s51
      %s54 = sphi 0, %s53
      %s68 = sphi 0, %s54
      %s72 = sphi 0, %s72
      %s74 = sphi 0, %s72
      %s75 = sphi 0, %s74
      %s89 = sphi 0, %s75
      %s93 = sphi 0, %s93
      %s95 = sphi 0, %s93
      %s96 = sphi 0, %s95
      %s110 = sphi 0, %s96
      %s114 = sphi 0, %s114
      %s116 = sphi 0, %s114
      %s117 = sphi 0, %s116
      %s131 = sphi 0, %s117
      %s135 = sphi 0, %s135
      %s137 = sphi 0, %s135
      %s138 = sphi 0, %s137
      %s152 = sphi 0, %s138
      %s156 = sphi 0, %s156
      %s158 = sphi 0, %s156
      %s159 = sphi 0, %s158
      %s173 = sphi 0, %s159
      %s177 = sphi 0, %s177
      %s179 = sphi 0, %s177
      %s180 = sphi 0, %s179
      %s194 = sphi 0, %s180
      %s200 = sphi 0, %s202
      %s203 = sphi 0, %s200
      %s204 = sphi 0, %s203
      %s220 = sphi 0, %s204
    $region4: #{tpu_custom_call.1} parent=1 // loop_header_branch
      %20 = sbr.rel (%p18) target = $region8
    $region5: #{tpu_custom_call.1} parent=1 // loop_body
      %s22 = ssub.s32 %s17, 1
      %s23 = ssub.s32 %s17, 2
      %s24 = sadd.s32 %s17, 1
      %s25 = ssub.s32 %s17, %s24
      %p26 = scmp.eq.s32.totalorder %s25, 0
      %s28 = sadd.s32 %s27, 1
      %s29 = scalar_select %p26, %s27, %s28
      %p32 = pneg %p26
      %p33 = scmp.eq.s32.totalorder %s17, 1
      %p34 = por %p32, %p33
      %p35 = scmp.ne.s32.totalorder %s27, %s30
      %p36 = scmp.eq.s32.totalorder %s17, 0
      %p37 = por %p35, %p36
      %p38 = scmp.ne.s32.totalorder %s27, %s30
      %p39 = scmp.eq.s32.totalorder %s22, 1
      %p40 = por %p38, %p39
      %p41 = scmp.ne.s32.totalorder %s30, %s31
      %p42 = scmp.eq.s32.totalorder %s22, 0
      %p43 = por %p41, %p42
      %p44 = scmp.ne.s32.totalorder %s30, %s31
      %p45 = scmp.eq.s32.totalorder %s23, 1
      %p46 = por %p44, %p45
      %p48 = scmp.ne.s32.totalorder %s31, %s47
      %p49 = scmp.eq.s32.totalorder %s23, 0
      %p50 = por %p48, %p49
      %s52 = sadd.s32 %s51, 1
      %p55 = scmp.eq.s32.totalorder %s17, 1
      %p56 = scmp.ne.s32.totalorder %s51, %s53
      %p57 = scmp.eq.s32.totalorder %s17, 0
      %p58 = por %p56, %p57
      %p59 = scmp.ne.s32.totalorder %s51, %s53
      %p60 = scmp.eq.s32.totalorder %s22, 1
      %p61 = por %p59, %p60
      %p62 = scmp.ne.s32.totalorder %s53, %s54
      %p63 = scmp.eq.s32.totalorder %s22, 0
      %p64 = por %p62, %p63
      %p65 = scmp.ne.s32.totalorder %s53, %s54
      %p66 = scmp.eq.s32.totalorder %s23, 1
      %p67 = por %p65, %p66
      %p69 = scmp.ne.s32.totalorder %s54, %s68
      %p70 = scmp.eq.s32.totalorder %s23, 0
      %p71 = por %p69, %p70
      %s73 = sadd.s32 %s72, 1
      %p76 = scmp.eq.s32.totalorder %s17, 1
      %p77 = scmp.ne.s32.totalorder %s72, %s74
      %p78 = scmp.eq.s32.totalorder %s17, 0
      %p79 = por %p77, %p78
      %p80 = scmp.ne.s32.totalorder %s72, %s74
      %p81 = scmp.eq.s32.totalorder %s22, 1
      %p82 = por %p80, %p81
      %p83 = scmp.ne.s32.totalorder %s74, %s75
      %p84 = scmp.eq.s32.totalorder %s22, 0
      %p85 = por %p83, %p84
      %p86 = scmp.ne.s32.totalorder %s74, %s75
      %p87 = scmp.eq.s32.totalorder %s23, 1
      %p88 = por %p86, %p87
      %p90 = scmp.ne.s32.totalorder %s75, %s89
      %p91 = scmp.eq.s32.totalorder %s23, 0
      %p92 = por %p90, %p91
      %s94 = sadd.s32 %s93, 1
      %p97 = scmp.eq.s32.totalorder %s17, 1
      %p98 = scmp.ne.s32.totalorder %s93, %s95
      %p99 = scmp.eq.s32.totalorder %s17, 0
      %p100 = por %p98, %p99
      %p101 = scmp.ne.s32.totalorder %s93, %s95
      %p102 = scmp.eq.s32.totalorder %s22, 1
      %p103 = por %p101, %p102
      %p104 = scmp.ne.s32.totalorder %s95, %s96
      %p105 = scmp.eq.s32.totalorder %s22, 0
      %p106 = por %p104, %p105
      %p107 = scmp.ne.s32.totalorder %s95, %s96
      %p108 = scmp.eq.s32.totalorder %s23, 1
      %p109 = por %p107, %p108
      %p111 = scmp.ne.s32.totalorder %s96, %s110
      %p112 = scmp.eq.s32.totalorder %s23, 0
      %p113 = por %p111, %p112
      %s115 = sadd.s32 %s114, 1
      %p118 = scmp.eq.s32.totalorder %s17, 1
      %p119 = scmp.ne.s32.totalorder %s114, %s116
      %p120 = scmp.eq.s32.totalorder %s17, 0
      %p121 = por %p119, %p120
      %p122 = scmp.ne.s32.totalorder %s114, %s116
      %p123 = scmp.eq.s32.totalorder %s22, 1
      %p124 = por %p122, %p123
      %p125 = scmp.ne.s32.totalorder %s116, %s117
      %p126 = scmp.eq.s32.totalorder %s22, 0
      %p127 = por %p125, %p126
      %p128 = scmp.ne.s32.totalorder %s116, %s117
      %p129 = scmp.eq.s32.totalorder %s23, 1
      %p130 = por %p128, %p129
      %p132 = scmp.ne.s32.totalorder %s117, %s131
      %p133 = scmp.eq.s32.totalorder %s23, 0
      %p134 = por %p132, %p133
      %s136 = sadd.s32 %s135, 1
      %p139 = scmp.eq.s32.totalorder %s17, 1
      %p140 = scmp.ne.s32.totalorder %s135, %s137
      %p141 = scmp.eq.s32.totalorder %s17, 0
      %p142 = por %p140, %p141
      %p143 = scmp.ne.s32.totalorder %s135, %s137
      %p144 = scmp.eq.s32.totalorder %s22, 1
      %p145 = por %p143, %p144
      %p146 = scmp.ne.s32.totalorder %s137, %s138
      %p147 = scmp.eq.s32.totalorder %s22, 0
      %p148 = por %p146, %p147
      %p149 = scmp.ne.s32.totalorder %s137, %s138
      %p150 = scmp.eq.s32.totalorder %s23, 1
      %p151 = por %p149, %p150
      %p153 = scmp.ne.s32.totalorder %s138, %s152
      %p154 = scmp.eq.s32.totalorder %s23, 0
      %p155 = por %p153, %p154
      %s157 = sadd.s32 %s156, 1
      %p160 = scmp.eq.s32.totalorder %s17, 1
      %p161 = scmp.ne.s32.totalorder %s156, %s158
      %p162 = scmp.eq.s32.totalorder %s17, 0
      %p163 = por %p161, %p162
      %p164 = scmp.ne.s32.totalorder %s156, %s158
      %p165 = scmp.eq.s32.totalorder %s22, 1
      %p166 = por %p164, %p165
      %p167 = scmp.ne.s32.totalorder %s158, %s159
      %p168 = scmp.eq.s32.totalorder %s22, 0
      %p169 = por %p167, %p168
      %p170 = scmp.ne.s32.totalorder %s158, %s159
      %p171 = scmp.eq.s32.totalorder %s23, 1
      %p172 = por %p170, %p171
      %p174 = scmp.ne.s32.totalorder %s159, %s173
      %p175 = scmp.eq.s32.totalorder %s23, 0
      %p176 = por %p174, %p175
      %s178 = sadd.s32 %s177, 1
      %p181 = scmp.eq.s32.totalorder %s17, 1
      %p182 = scmp.ne.s32.totalorder %s177, %s179
      %p183 = scmp.eq.s32.totalorder %s17, 0
      %p184 = por %p182, %p183
      %p185 = scmp.ne.s32.totalorder %s177, %s179
      %p186 = scmp.eq.s32.totalorder %s22, 1
      %p187 = por %p185, %p186
      %p188 = scmp.ne.s32.totalorder %s179, %s180
      %p189 = scmp.eq.s32.totalorder %s22, 0
      %p190 = por %p188, %p189
      %p191 = scmp.ne.s32.totalorder %s179, %s180
      %p192 = scmp.eq.s32.totalorder %s23, 1
      %p193 = por %p191, %p192
      %p195 = scmp.ne.s32.totalorder %s180, %s194
      %p196 = scmp.eq.s32.totalorder %s23, 0
      %p197 = por %p195, %p196
      %s198 = ssub.s32 %s17, %s24
      %p199 = scmp.eq.s32.totalorder %s198, 0
      %s201 = sadd.s32 %s200, 1
      %s202 = scalar_select %p199, %s200, %s201
      %p205 = pneg %p199
      %p206 = scmp.eq.s32.totalorder %s17, 1
      %p207 = por %p205, %p206
      %p208 = scmp.ne.s32.totalorder %s200, %s203
      %p209 = scmp.eq.s32.totalorder %s17, 0
      %p210 = por %p208, %p209
      %p211 = scmp.ne.s32.totalorder %s200, %s203
      %p212 = scmp.eq.s32.totalorder %s22, 1
      %p213 = por %p211, %p212
      %p214 = scmp.ne.s32.totalorder %s203, %s204
      %p215 = scmp.eq.s32.totalorder %s22, 0
      %p216 = por %p214, %p215
      %p217 = scmp.ne.s32.totalorder %s203, %s204
      %p218 = scmp.eq.s32.totalorder %s23, 1
      %p219 = por %p217, %p218
      %p221 = scmp.ne.s32.totalorder %s204, %s220
      %p222 = scmp.eq.s32.totalorder %s23, 0
      %p223 = por %p221, %p222
      %p224 = scmp.le.s32.totalorder 1, %s17
      %p225 = scmp.lt.s32.totalorder %s17, 3
      %p226 = pnand %p224, %p225
      %p227 = pneg %p226
      // Predicated region
      $region9: #{tpu_custom_call.1} parent=5 // pred_check
        _
      $region10: #{tpu_custom_call.1} parent=5 // pred_check_branch
        %229 = sbr.rel (%p226) target = $region12
      $region11: #{tpu_custom_call.1} parent=5 // pred_region
        %s230 = ssub.s32 %s17, 1
        // Predicated region
        $region13: #{tpu_custom_call.1} parent=11 // pred_check
          %p231 = pneg %p64
        $region14: #{tpu_custom_call.1} parent=11 // pred_check_branch
          %233 = sbr.rel (%p231) target = $region16
        $region15: #{tpu_custom_call.1} parent=11 // pred_region
          _
        $region16: #{tpu_custom_call.1} parent=11 // pred_fallthru
          _
        // Predicated region
        $region17: #{tpu_custom_call.1} parent=11 // pred_check
          %p234 = pneg %p85
        $region18: #{tpu_custom_call.1} parent=11 // pred_check_branch
          %236 = sbr.rel (%p234) target = $region20
        $region19: #{tpu_custom_call.1} parent=11 // pred_region
          _
        $region20: #{tpu_custom_call.1} parent=11 // pred_fallthru
          _
        // Predicated region
        $region21: #{tpu_custom_call.1} parent=11 // pred_check
          %p237 = pneg %p106
        $region22: #{tpu_custom_call.1} parent=11 // pred_check_branch
          %239 = sbr.rel (%p237) target = $region24
        $region23: #{tpu_custom_call.1} parent=11 // pred_region
          _
        $region24: #{tpu_custom_call.1} parent=11 // pred_fallthru
          _
        // Predicated region
        $region25: #{tpu_custom_call.1} parent=11 // pred_check
          %p240 = pneg %p127
        $region26: #{tpu_custom_call.1} parent=11 // pred_check_branch
          %242 = sbr.rel (%p240) target = $region28
        $region27: #{tpu_custom_call.1} parent=11 // pred_region
          _
        $region28: #{tpu_custom_call.1} parent=11 // pred_fallthru
          _
        // Predicated region
        $region29: #{tpu_custom_call.1} parent=11 // pred_check
          %p243 = pneg %p148
        $region30: #{tpu_custom_call.1} parent=11 // pred_check_branch
          %245 = sbr.rel (%p243) target = $region32
        $region31: #{tpu_custom_call.1} parent=11 // pred_region
          _
        $region32: #{tpu_custom_call.1} parent=11 // pred_fallthru
          _
        // Predicated region
        $region33: #{tpu_custom_call.1} parent=11 // pred_check
          %p246 = pneg %p169
        $region34: #{tpu_custom_call.1} parent=11 // pred_check_branch
          %248 = sbr.rel (%p246) target = $region36
        $region35: #{tpu_custom_call.1} parent=11 // pred_region
          _
        $region36: #{tpu_custom_call.1} parent=11 // pred_fallthru
          _
        // Predicated region
        $region37: #{tpu_custom_call.1} parent=11 // pred_check
          %p249 = pneg %p190
        $region38: #{tpu_custom_call.1} parent=11 // pred_check_branch
          %251 = sbr.rel (%p249) target = $region40
        $region39: #{tpu_custom_call.1} parent=11 // pred_region
          _
        $region40: #{tpu_custom_call.1} parent=11 // pred_fallthru
          _
      $region12: #{tpu_custom_call.1} parent=5 // pred_fallthru
        _
      %p252 = scmp.lt.s32.totalorder %s17, 2
      // Predicated region
      $region41: #{tpu_custom_call.1} parent=5 // pred_check
        %p253 = pneg %p252
      $region42: #{tpu_custom_call.1} parent=5 // pred_check_branch
        %255 = sbr.rel (%p253) target = $region44
      $region43: #{tpu_custom_call.1} parent=5 // pred_region
        // Predicated region
        $region45: #{tpu_custom_call.1} parent=43 // pred_check
          %p256 = pneg %p37
        $region46: #{tpu_custom_call.1} parent=43 // pred_check_branch
          %258 = sbr.rel (%p256) target = $region48
        $region47: #{tpu_custom_call.1} parent=43 // pred_region
          %p259 = scmp.lt.s32.totalorder %s17, 1
          %s260 = scalar_select %p259, %s17, 1
          %s261 = smul.addr %s260, 2
          %s262 = smul.addr %s261, 4
          %s263 = scalar_lea.vmem %s0, %s262
        $region48: #{tpu_custom_call.1} parent=43 // pred_fallthru
          _
      $region44: #{tpu_custom_call.1} parent=5 // pred_fallthru
        _
      %p264 = scmp.le.s32.totalorder 1, %s17
      %p265 = scmp.lt.s32.totalorder %s17, 3
      %p266 = pnand %p264, %p265
      %p267 = pneg %p266
      // Predicated region
      $region49: #{tpu_custom_call.1} parent=5 // pred_check
        _
      $region50: #{tpu_custom_call.1} parent=5 // pred_check_branch
        %269 = sbr.rel (%p266) target = $region52
      $region51: #{tpu_custom_call.1} parent=5 // pred_region
        %s270 = ssub.s32 %s17, 1
        %p271 = scmp.lt.s32.totalorder %s22, 1
        %s272 = scalar_select %p271, %s22, 1
        %s273 = smul.addr %s272, 2
        %s274 = smul.addr %s273, 4
        %s275 = scalar_lea.vmem %s0, %s274
        %p276 = pneg %p43
        %p277 = pneg %p40
        %p278 = pneg %p64
        %p279 = pneg %p61
        %p280 = pneg %p85
        %p281 = pneg %p82
        %p282 = pneg %p106
        %p283 = pneg %p103
        %p284 = pneg %p127
        %p285 = pneg %p124
        %p286 = pneg %p148
        %p287 = pneg %p145
        %p288 = pneg %p169
        %p289 = pneg %p166
        %p290 = pneg %p190
        %p291 = pneg %p187
        %p292 = pneg %p216
        %p293 = pneg %p213
        %s294 = sand.u32 %s203, 1
        %s295 = scalar_lea.sflag [#allocation3], %s294
        %s296 = sand.u32 %s203, 1
        %s297 = smul.addr %s296, 8
        %s298 = scalar_lea.vmem [#allocation2], %s297
        %p299 = scmp.lt.s32.totalorder %s22, 1
        %s300 = scalar_select %p299, %s22, 1
        %s301 = smul.addr %s300, 2
        %s302 = smul.addr %s301, 4
        %s303 = scalar_lea.vmem %s0, %s302
        %v304 = vld [vmem:[%s303] sm:$0xff]
        %v305 = vld [vmem:[%s7] ss:$2 sm:$0x3]
        %s306 = scalar_lea.vmem %s7, 1
        %v307 = vld [vmem:[%s306] ss:$2 sm:$0x3]
        %vm308 = vcmp.ge.s32.totalorder %v305, 1
        %vm309 = vcmp.ge.s32.totalorder %v307, 1
        %vm310 = vmand %vm308, %vm309
        %vm311 = vcmp.lt.s32.totalorder %v307, 15
        %vm312 = vmand %vm308, %vm311
        %vm313 = vcmp.lt.s32.totalorder %v305, 15
        %vm314 = vmand %vm313, %vm309
        %vm315 = vmand %vm313, %vm311
        %v317 = vcombine.high %v304, %v304
        %319 = vrot.lane.b32.xlu0 %v304, 17
        %v320 = vpop.permute.xlu0 %319
        %321 = vrot.lane.b32.xlu0 %v317, 17
        %v322 = vpop.permute.xlu0 %321
        %v323 = vlaneseq
        %v324 = vand.u32 %v323, 127
        %vm325 = vcmp.lt.s32.totalorder %v324, 17
        %v326 = vsel %vm325, %v320, %v322
        %v327 = vsel %vm325, %v322, %v320
        %v328 = vsel %vm310, 1, 0
        %v329 = vlaneseq
        %v330 = vshrl.u32 %v329, 7
        %v331 = vsub.s32 0, %v330
        %v332 = vrot.slane %v328, %v331
        %v333 = vlaneseq
        %v334 = vshrl.u32 %v333, 7
        %v335 = vsub.s32 1, %v334
        %v336 = vrot.slane %v328, %v335
        %vm337 = vcmp.eq.s32.totalorder %v332, 1
        %vm338 = vcmp.eq.s32.totalorder %v336, 1
        %v339 = vsel %vm337, %v327, 0.0
        %v340 = vsel %vm338, %v326, 0.0
        %v341 = vld [vmem:[%s1] sm:$0xf]
        %342 = vrot.lane.b32.xlu0 %v304, 16
        %v343 = vpop.permute.xlu0 %342
        %344 = vrot.lane.b32.xlu0 %v317, 16
        %v345 = vpop.permute.xlu0 %344
        %vm346 = vcmp.lt.s32.totalorder %v324, 16
        %v347 = vsel %vm346, %v343, %v345
        %v348 = vsel %vm346, %v345, %v343
        %v349 = vsel %vm308, 1, 0
        %v350 = vlaneseq
        %v351 = vshrl.u32 %v350, 7
        %v352 = vsub.s32 0, %v351
        %v353 = vrot.slane %v349, %v352
        %v354 = vlaneseq
        %v355 = vshrl.u32 %v354, 7
        %v356 = vsub.s32 1, %v355
        %v357 = vrot.slane %v349, %v356
        %vm358 = vcmp.eq.s32.totalorder %v353, 1
        %vm359 = vcmp.eq.s32.totalorder %v357, 1
        %v360 = vsel %vm358, %v348, 0.0
        %v361 = vsel %vm359, %v347, 0.0
        %s362 = scalar_lea.vmem %s1, 4
        %v363 = vld [vmem:[%s362] sm:$0xf]
        %vm364 = vcmask 31744
        %v366 = vsel %vm364, %v363, 0
        %vm368 = vcmask 1043456
        %v370 = vsel %vm368, %v360, 0
        %v373 = vsel %vm368, %v361, 0
        %375 = vmatprep.subr.mxu0 %v373
        %376 = vmatpush1.msra.mxu0 %v370
        %377 = vmatprep.subr.mxu0 0.0
        %378 = vmatpush1.msra.mxu0 0.0
        %379 = vmatprep.subr.mxu0 0.0
        %380 = vmatpush1.msra.mxu0 0.0
        %381 = vmatprep.subr.mxu0 0.0
        %382 = vmatpush1.msra.mxu0 0.0
        %383 = vmatprep.subr.mxu0 0.0
        %384 = vmatpush1.msra.mxu0 0.0
        %385 = vmatprep.subr.mxu0 0.0
        %386 = vmatpush1.msra.mxu0 0.0
        %387 = vmatprep.subr.mxu0 0.0
        %388 = vmatpush1.msra.mxu0 0.0
        %389 = vmatprep.subr.mxu0 0.0
        %390 = vmatpush1.msra.mxu0 0.0
        %391 = vmatprep.subr.mxu0 0.0
        %392 = vmatpush1.msra.mxu0 0.0
        %393 = vmatprep.subr.mxu0 0.0
        %394 = vmatpush1.msra.mxu0 0.0
        %395 = vmatprep.subr.mxu0 0.0
        %396 = vmatpush1.msra.mxu0 0.0
        %397 = vmatprep.subr.mxu0 0.0
        %398 = vmatpush1.msra.mxu0 0.0
        %399 = vmatprep.subr.mxu0 0.0
        %400 = vmatpush1.msra.mxu0 0.0
        %401 = vmatprep.subr.mxu0 0.0
        %402 = vmatpush1.msra.mxu0 0.0
        %403 = vmatprep.subr.mxu0 0.0
        %404 = vmatpush1.msra.mxu0 0.0
        %405 = vmatprep.subr.mxu0 0.0
        %406 = vmatpush1.msra.mxu0 0.0
        %407 = vmatprep.subr.mxu0 0.0
        %408 = vmatpush1.msra.mxu0 0.0
        %409 = vmatprep.subr.mxu0 0.0
        %410 = vmatpush1.msra.mxu0 0.0
        %411 = vmatprep.subr.mxu0 0.0
        %412 = vmatpush1.msra.mxu0 0.0
        %413 = vmatprep.subr.mxu0 0.0
        %414 = vmatpush1.msra.mxu0 0.0
        %415 = vmatprep.subr.mxu0 0.0
        %416 = vmatpush1.msra.mxu0 0.0
        %417 = vmatprep.subr.mxu0 0.0
        %418 = vmatpush1.msra.mxu0 0.0
        %419 = vmatprep.subr.mxu0 0.0
        %420 = vmatpush1.msra.mxu0 0.0
        %421 = vmatprep.subr.mxu0 0.0
        %422 = vmatpush1.msra.mxu0 0.0
        %423 = vmatprep.subr.mxu0 0.0
        %424 = vmatpush1.msra.mxu0 0.0
        %425 = vmatprep.subr.mxu0 0.0
        %426 = vmatpush1.msra.mxu0 0.0
        %427 = vmatprep.subr.mxu0 0.0
        %428 = vmatpush1.msra.mxu0 0.0
        %429 = vmatprep.subr.mxu0 0.0
        %430 = vmatpush1.msra.mxu0 0.0
        %431 = vmatprep.subr.mxu0 0.0
        %432 = vmatpush1.msra.mxu0 0.0
        %433 = vmatprep.subr.mxu0 0.0
        %434 = vmatpush1.msra.mxu0 0.0
        %435 = vmatprep.subr.mxu0 0.0
        %436 = vmatpush1.msra.mxu0 0.0
        %437 = vmatprep.subr.mxu0 0.0
        %438 = vmatpush1.msra.mxu0 0.0
        %439 = vmatprep.mubr.f32.mxu0 0.0
        %440 = vmatmul.mubr.f32.gmra.mrb[0].mxu0 %v366
        %v441 = vpop.f32.mrb[0].mxu0
        %v442 = vadd.f32 0.0, %v441
        %v443 = vpop.f32.mrb[0].mxu0
        %v444 = vadd.f32 0.0, %v443
        %445 = vdwg.mxu0
        %v447 = vsel %vm364, %v341, 0
        %v450 = vsel %vm368, %v339, 0
        %v453 = vsel %vm368, %v340, 0
        %455 = vmatprep.subr.mxu0 %v453
        %456 = vmatpush1.msra.mxu0 %v450
        %457 = vmatprep.subr.mxu0 0.0
        %458 = vmatpush1.msra.mxu0 0.0
        %459 = vmatprep.subr.mxu0 0.0
        %460 = vmatpush1.msra.mxu0 0.0
        %461 = vmatprep.subr.mxu0 0.0
        %462 = vmatpush1.msra.mxu0 0.0
        %463 = vmatprep.subr.mxu0 0.0
        %464 = vmatpush1.msra.mxu0 0.0
        %465 = vmatprep.subr.mxu0 0.0
        %466 = vmatpush1.msra.mxu0 0.0
        %467 = vmatprep.subr.mxu0 0.0
        %468 = vmatpush1.msra.mxu0 0.0
        %469 = vmatprep.subr.mxu0 0.0
        %470 = vmatpush1.msra.mxu0 0.0
        %471 = vmatprep.subr.mxu0 0.0
        %472 = vmatpush1.msra.mxu0 0.0
        %473 = vmatprep.subr.mxu0 0.0
        %474 = vmatpush1.msra.mxu0 0.0
        %475 = vmatprep.subr.mxu0 0.0
        %476 = vmatpush1.msra.mxu0 0.0
        %477 = vmatprep.subr.mxu0 0.0
        %478 = vmatpush1.msra.mxu0 0.0
        %479 = vmatprep.subr.mxu0 0.0
        %480 = vmatpush1.msra.mxu0 0.0
        %481 = vmatprep.subr.mxu0 0.0
        %482 = vmatpush1.msra.mxu0 0.0
        %483 = vmatprep.subr.mxu0 0.0
        %484 = vmatpush1.msra.mxu0 0.0
        %485 = vmatprep.subr.mxu0 0.0
        %486 = vmatpush1.msra.mxu0 0.0
        %487 = vmatprep.subr.mxu0 0.0
        %488 = vmatpush1.msra.mxu0 0.0
        %489 = vmatprep.subr.mxu0 0.0
        %490 = vmatpush1.msra.mxu0 0.0
        %491 = vmatprep.subr.mxu0 0.0
        %492 = vmatpush1.msra.mxu0 0.0
        %493 = vmatprep.subr.mxu0 0.0
        %494 = vmatpush1.msra.mxu0 0.0
        %495 = vmatprep.subr.mxu0 0.0
        %496 = vmatpush1.msra.mxu0 0.0
        %497 = vmatprep.subr.mxu0 0.0
        %498 = vmatpush1.msra.mxu0 0.0
        %499 = vmatprep.subr.mxu0 0.0
        %500 = vmatpush1.msra.mxu0 0.0
        %501 = vmatprep.subr.mxu0 0.0
        %502 = vmatpush1.msra.mxu0 0.0
        %503 = vmatprep.subr.mxu0 0.0
        %504 = vmatpush1.msra.mxu0 0.0
        %505 = vmatprep.subr.mxu0 0.0
        %506 = vmatpush1.msra.mxu0 0.0
        %507 = vmatprep.subr.mxu0 0.0
        %508 = vmatpush1.msra.mxu0 0.0
        %509 = vmatprep.subr.mxu0 0.0
        %510 = vmatpush1.msra.mxu0 0.0
        %511 = vmatprep.subr.mxu0 0.0
        %512 = vmatpush1.msra.mxu0 0.0
        %513 = vmatprep.subr.mxu0 0.0
        %514 = vmatpush1.msra.mxu0 0.0
        %515 = vmatprep.subr.mxu0 0.0
        %516 = vmatpush1.msra.mxu0 0.0
        %517 = vmatprep.subr.mxu0 0.0
        %518 = vmatpush1.msra.mxu0 0.0
        %519 = vmatprep.mubr.f32.mxu0 0.0
        %520 = vmatmul.mubr.f32.gmra.mrb[0].mxu0 %v447
        %v521 = vpop.f32.mrb[0].mxu0
        %v522 = vadd.f32 %v442, %v521
        %v523 = vpop.f32.mrb[0].mxu0
        %v524 = vadd.f32 %v444, %v523
        %525 = vdwg.mxu0
        %526 = vrot.lane.b32.xlu0 %v304, 15
        %v527 = vpop.permute.xlu0 %526
        %528 = vrot.lane.b32.xlu0 %v317, 15
        %v529 = vpop.permute.xlu0 %528
        %vm530 = vcmp.lt.s32.totalorder %v324, 15
        %v531 = vsel %vm530, %v527, %v529
        %v532 = vsel %vm530, %v529, %v527
        %v533 = vsel %vm312, 1, 0
        %v534 = vlaneseq
        %v535 = vshrl.u32 %v534, 7
        %v536 = vsub.s32 0, %v535
        %v537 = vrot.slane %v533, %v536
        %v538 = vlaneseq
        %v539 = vshrl.u32 %v538, 7
        %v540 = vsub.s32 1, %v539
        %v541 = vrot.slane %v533, %v540
        %vm542 = vcmp.eq.s32.totalorder %v537, 1
        %vm543 = vcmp.eq.s32.totalorder %v541, 1
        %v544 = vsel %vm542, %v532, 0.0
        %v545 = vsel %vm543, %v531, 0.0
        %s546 = scalar_lea.vmem %s1, 8
        %v547 = vld [vmem:[%s546] sm:$0xf]
        %v549 = vsel %vm364, %v547, 0
        %v552 = vsel %vm368, %v544, 0
        %v555 = vsel %vm368, %v545, 0
        %557 = vmatprep.subr.mxu0 %v555
        %558 = vmatpush1.msra.mxu0 %v552
        %559 = vmatprep.subr.mxu0 0.0
        %560 = vmatpush1.msra.mxu0 0.0
        %561 = vmatprep.subr.mxu0 0.0
        %562 = vmatpush1.msra.mxu0 0.0
        %563 = vmatprep.subr.mxu0 0.0
        %564 = vmatpush1.msra.mxu0 0.0
        %565 = vmatprep.subr.mxu0 0.0
        %566 = vmatpush1.msra.mxu0 0.0
        %567 = vmatprep.subr.mxu0 0.0
        %568 = vmatpush1.msra.mxu0 0.0
        %569 = vmatprep.subr.mxu0 0.0
        %570 = vmatpush1.msra.mxu0 0.0
        %571 = vmatprep.subr.mxu0 0.0
        %572 = vmatpush1.msra.mxu0 0.0
        %573 = vmatprep.subr.mxu0 0.0
        %574 = vmatpush1.msra.mxu0 0.0
        %575 = vmatprep.subr.mxu0 0.0
        %576 = vmatpush1.msra.mxu0 0.0
        %577 = vmatprep.subr.mxu0 0.0
        %578 = vmatpush1.msra.mxu0 0.0
        %579 = vmatprep.subr.mxu0 0.0
        %580 = vmatpush1.msra.mxu0 0.0
        %581 = vmatprep.subr.mxu0 0.0
        %582 = vmatpush1.msra.mxu0 0.0
        %583 = vmatprep.subr.mxu0 0.0
        %584 = vmatpush1.msra.mxu0 0.0
        %585 = vmatprep.subr.mxu0 0.0
        %586 = vmatpush1.msra.mxu0 0.0
        %587 = vmatprep.subr.mxu0 0.0
        %588 = vmatpush1.msra.mxu0 0.0
        %589 = vmatprep.subr.mxu0 0.0
        %590 = vmatpush1.msra.mxu0 0.0
        %591 = vmatprep.subr.mxu0 0.0
        %592 = vmatpush1.msra.mxu0 0.0
        %593 = vmatprep.subr.mxu0 0.0
        %594 = vmatpush1.msra.mxu0 0.0
        %595 = vmatprep.subr.mxu0 0.0
        %596 = vmatpush1.msra.mxu0 0.0
        %597 = vmatprep.subr.mxu0 0.0
        %598 = vmatpush1.msra.mxu0 0.0
        %599 = vmatprep.subr.mxu0 0.0
        %600 = vmatpush1.msra.mxu0 0.0
        %601 = vmatprep.subr.mxu0 0.0
        %602 = vmatpush1.msra.mxu0 0.0
        %603 = vmatprep.subr.mxu0 0.0
        %604 = vmatpush1.msra.mxu0 0.0
        %605 = vmatprep.subr.mxu0 0.0
        %606 = vmatpush1.msra.mxu0 0.0
        %607 = vmatprep.subr.mxu0 0.0
        %608 = vmatpush1.msra.mxu0 0.0
        %609 = vmatprep.subr.mxu0 0.0
        %610 = vmatpush1.msra.mxu0 0.0
        %611 = vmatprep.subr.mxu0 0.0
        %612 = vmatpush1.msra.mxu0 0.0
        %613 = vmatprep.subr.mxu0 0.0
        %614 = vmatpush1.msra.mxu0 0.0
        %615 = vmatprep.subr.mxu0 0.0
        %616 = vmatpush1.msra.mxu0 0.0
        %617 = vmatprep.subr.mxu0 0.0
        %618 = vmatpush1.msra.mxu0 0.0
        %619 = vmatprep.subr.mxu0 0.0
        %620 = vmatpush1.msra.mxu0 0.0
        %621 = vmatprep.mubr.f32.mxu0 0.0
        %622 = vmatmul.mubr.f32.gmra.mrb[0].mxu0 %v549
        %v623 = vpop.f32.mrb[0].mxu0
        %v624 = vadd.f32 0.0, %v623
        %v625 = vpop.f32.mrb[0].mxu0
        %v626 = vadd.f32 0.0, %v625
        %627 = vdwg.mxu0
        %v628 = vadd.f32 %v522, %v624
        %v629 = vadd.f32 %v524, %v626
        %630 = vrot.lane.b32.xlu0 %v304, 1
        %v631 = vpop.permute.xlu0 %630
        %632 = vrot.lane.b32.xlu0 %v317, 1
        %v633 = vpop.permute.xlu0 %632
        %vm634 = vcmp.lt.s32.totalorder %v324, 1
        %v635 = vsel %vm634, %v631, %v633
        %v636 = vsel %vm634, %v633, %v631
        %v637 = vsel %vm309, 1, 0
        %v638 = vlaneseq
        %v639 = vshrl.u32 %v638, 7
        %v640 = vsub.s32 0, %v639
        %v641 = vrot.slane %v637, %v640
        %v642 = vlaneseq
        %v643 = vshrl.u32 %v642, 7
        %v644 = vsub.s32 1, %v643
        %v645 = vrot.slane %v637, %v644
        %vm646 = vcmp.eq.s32.totalorder %v641, 1
        %vm647 = vcmp.eq.s32.totalorder %v645, 1
        %v648 = vsel %vm646, %v636, 0.0
        %v649 = vsel %vm647, %v635, 0.0
        %s650 = scalar_lea.vmem %s1, 12
        %v651 = vld [vmem:[%s650] sm:$0xf]
        %v653 = vsel %vm364, %v651, 0
        %v656 = vsel %vm368, %v648, 0
        %v659 = vsel %vm368, %v649, 0
        %661 = vmatprep.subr.mxu0 %v659
        %662 = vmatpush1.msra.mxu0 %v656
        %663 = vmatprep.subr.mxu0 0.0
        %664 = vmatpush1.msra.mxu0 0.0
        %665 = vmatprep.subr.mxu0 0.0
        %666 = vmatpush1.msra.mxu0 0.0
        %667 = vmatprep.subr.mxu0 0.0
        %668 = vmatpush1.msra.mxu0 0.0
        %669 = vmatprep.subr.mxu0 0.0
        %670 = vmatpush1.msra.mxu0 0.0
        %671 = vmatprep.subr.mxu0 0.0
        %672 = vmatpush1.msra.mxu0 0.0
        %673 = vmatprep.subr.mxu0 0.0
        %674 = vmatpush1.msra.mxu0 0.0
        %675 = vmatprep.subr.mxu0 0.0
        %676 = vmatpush1.msra.mxu0 0.0
        %677 = vmatprep.subr.mxu0 0.0
        %678 = vmatpush1.msra.mxu0 0.0
        %679 = vmatprep.subr.mxu0 0.0
        %680 = vmatpush1.msra.mxu0 0.0
        %681 = vmatprep.subr.mxu0 0.0
        %682 = vmatpush1.msra.mxu0 0.0
        %683 = vmatprep.subr.mxu0 0.0
        %684 = vmatpush1.msra.mxu0 0.0
        %685 = vmatprep.subr.mxu0 0.0
        %686 = vmatpush1.msra.mxu0 0.0
        %687 = vmatprep.subr.mxu0 0.0
        %688 = vmatpush1.msra.mxu0 0.0
        %689 = vmatprep.subr.mxu0 0.0
        %690 = vmatpush1.msra.mxu0 0.0
        %691 = vmatprep.subr.mxu0 0.0
        %692 = vmatpush1.msra.mxu0 0.0
        %693 = vmatprep.subr.mxu0 0.0
        %694 = vmatpush1.msra.mxu0 0.0
        %695 = vmatprep.subr.mxu0 0.0
        %696 = vmatpush1.msra.mxu0 0.0
        %697 = vmatprep.subr.mxu0 0.0
        %698 = vmatpush1.msra.mxu0 0.0
        %699 = vmatprep.subr.mxu0 0.0
        %700 = vmatpush1.msra.mxu0 0.0
        %701 = vmatprep.subr.mxu0 0.0
        %702 = vmatpush1.msra.mxu0 0.0
        %703 = vmatprep.subr.mxu0 0.0
        %704 = vmatpush1.msra.mxu0 0.0
        %705 = vmatprep.subr.mxu0 0.0
        %706 = vmatpush1.msra.mxu0 0.0
        %707 = vmatprep.subr.mxu0 0.0
        %708 = vmatpush1.msra.mxu0 0.0
        %709 = vmatprep.subr.mxu0 0.0
        %710 = vmatpush1.msra.mxu0 0.0
        %711 = vmatprep.subr.mxu0 0.0
        %712 = vmatpush1.msra.mxu0 0.0
        %713 = vmatprep.subr.mxu0 0.0
        %714 = vmatpush1.msra.mxu0 0.0
        %715 = vmatprep.subr.mxu0 0.0
        %716 = vmatpush1.msra.mxu0 0.0
        %717 = vmatprep.subr.mxu0 0.0
        %718 = vmatpush1.msra.mxu0 0.0
        %719 = vmatprep.subr.mxu0 0.0
        %720 = vmatpush1.msra.mxu0 0.0
        %721 = vmatprep.subr.mxu0 0.0
        %722 = vmatpush1.msra.mxu0 0.0
        %723 = vmatprep.subr.mxu0 0.0
        %724 = vmatpush1.msra.mxu0 0.0
        %725 = vmatprep.mubr.f32.mxu0 0.0
        %726 = vmatmul.mubr.f32.gmra.mrb[0].mxu0 %v653
        %v727 = vpop.f32.mrb[0].mxu0
        %v728 = vadd.f32 0.0, %v727
        %v729 = vpop.f32.mrb[0].mxu0
        %v730 = vadd.f32 0.0, %v729
        %731 = vdwg.mxu0
        %v732 = vadd.f32 %v628, %v728
        %v733 = vadd.f32 %v629, %v730
        %s734 = scalar_lea.vmem %s1, 16
        %v735 = vld [vmem:[%s734] sm:$0xf]
        %v737 = vsel %vm364, %v735, 0
        %v739 = vsel %vm368, %v304, 0
        %v741 = vsel %vm368, %v317, 0
        %743 = vmatprep.subr.mxu0 %v741
        %744 = vmatpush1.msra.mxu0 %v739
        %745 = vmatprep.subr.mxu0 0.0
        %746 = vmatpush1.msra.mxu0 0.0
        %747 = vmatprep.subr.mxu0 0.0
        %748 = vmatpush1.msra.mxu0 0.0
        %749 = vmatprep.subr.mxu0 0.0
        %750 = vmatpush1.msra.mxu0 0.0
        %751 = vmatprep.subr.mxu0 0.0
        %752 = vmatpush1.msra.mxu0 0.0
        %753 = vmatprep.subr.mxu0 0.0
        %754 = vmatpush1.msra.mxu0 0.0
        %755 = vmatprep.subr.mxu0 0.0
        %756 = vmatpush1.msra.mxu0 0.0
        %757 = vmatprep.subr.mxu0 0.0
        %758 = vmatpush1.msra.mxu0 0.0
        %759 = vmatprep.subr.mxu0 0.0
        %760 = vmatpush1.msra.mxu0 0.0
        %761 = vmatprep.subr.mxu0 0.0
        %762 = vmatpush1.msra.mxu0 0.0
        %763 = vmatprep.subr.mxu0 0.0
        %764 = vmatpush1.msra.mxu0 0.0
        %765 = vmatprep.subr.mxu0 0.0
        %766 = vmatpush1.msra.mxu0 0.0
        %767 = vmatprep.subr.mxu0 0.0
        %768 = vmatpush1.msra.mxu0 0.0
        %769 = vmatprep.subr.mxu0 0.0
        %770 = vmatpush1.msra.mxu0 0.0
        %771 = vmatprep.subr.mxu0 0.0
        %772 = vmatpush1.msra.mxu0 0.0
        %773 = vmatprep.subr.mxu0 0.0
        %774 = vmatpush1.msra.mxu0 0.0
        %775 = vmatprep.subr.mxu0 0.0
        %776 = vmatpush1.msra.mxu0 0.0
        %777 = vmatprep.subr.mxu0 0.0
        %778 = vmatpush1.msra.mxu0 0.0
        %779 = vmatprep.subr.mxu0 0.0
        %780 = vmatpush1.msra.mxu0 0.0
        %781 = vmatprep.subr.mxu0 0.0
        %782 = vmatpush1.msra.mxu0 0.0
        %783 = vmatprep.subr.mxu0 0.0
        %784 = vmatpush1.msra.mxu0 0.0
        %785 = vmatprep.subr.mxu0 0.0
        %786 = vmatpush1.msra.mxu0 0.0
        %787 = vmatprep.subr.mxu0 0.0
        %788 = vmatpush1.msra.mxu0 0.0
        %789 = vmatprep.subr.mxu0 0.0
        %790 = vmatpush1.msra.mxu0 0.0
        %791 = vmatprep.subr.mxu0 0.0
        %792 = vmatpush1.msra.mxu0 0.0
        %793 = vmatprep.subr.mxu0 0.0
        %794 = vmatpush1.msra.mxu0 0.0
        %795 = vmatprep.subr.mxu0 0.0
        %796 = vmatpush1.msra.mxu0 0.0
        %797 = vmatprep.subr.mxu0 0.0
        %798 = vmatpush1.msra.mxu0 0.0
        %799 = vmatprep.subr.mxu0 0.0
        %800 = vmatpush1.msra.mxu0 0.0
        %801 = vmatprep.subr.mxu0 0.0
        %802 = vmatpush1.msra.mxu0 0.0
        %803 = vmatprep.subr.mxu0 0.0
        %804 = vmatpush1.msra.mxu0 0.0
        %805 = vmatprep.subr.mxu0 0.0
        %806 = vmatpush1.msra.mxu0 0.0
        %807 = vmatprep.mubr.f32.mxu0 0.0
        %808 = vmatmul.mubr.f32.gmra.mrb[0].mxu0 %v737
        %v809 = vpop.f32.mrb[0].mxu0
        %v810 = vadd.f32 0.0, %v809
        %v811 = vpop.f32.mrb[0].mxu0
        %v812 = vadd.f32 0.0, %v811
        %813 = vdwg.mxu0
        %v814 = vadd.f32 %v732, %v810
        %v815 = vadd.f32 %v733, %v812
        %816 = vrot.lane.b32.xlu0 %v304, 127
        %v817 = vpop.permute.xlu0 %816
        %818 = vrot.lane.b32.xlu0 %v317, 127
        %v819 = vpop.permute.xlu0 %818
        %vm820 = vcmp.lt.s32.totalorder %v324, 127
        %v821 = vsel %vm820, %v817, %v819
        %v822 = vsel %vm820, %v819, %v817
        %v823 = vsel %vm311, 1, 0
        %v824 = vlaneseq
        %v825 = vshrl.u32 %v824, 7
        %v826 = vsub.s32 0, %v825
        %v827 = vrot.slane %v823, %v826
        %v828 = vlaneseq
        %v829 = vshrl.u32 %v828, 7
        %v830 = vsub.s32 1, %v829
        %v831 = vrot.slane %v823, %v830
        %vm832 = vcmp.eq.s32.totalorder %v827, 1
        %vm833 = vcmp.eq.s32.totalorder %v831, 1
        %v834 = vsel %vm832, %v821, 0.0
        %v835 = vsel %vm833, %v822, 0.0
        %s836 = scalar_lea.vmem %s1, 20
        %v837 = vld [vmem:[%s836] sm:$0xf]
        %v839 = vsel %vm364, %v837, 0
        %v842 = vsel %vm368, %v834, 0
        %v845 = vsel %vm368, %v835, 0
        %847 = vmatprep.subr.mxu0 %v845
        %848 = vmatpush1.msra.mxu0 %v842
        %849 = vmatprep.subr.mxu0 0.0
        %850 = vmatpush1.msra.mxu0 0.0
        %851 = vmatprep.subr.mxu0 0.0
        %852 = vmatpush1.msra.mxu0 0.0
        %853 = vmatprep.subr.mxu0 0.0
        %854 = vmatpush1.msra.mxu0 0.0
        %855 = vmatprep.subr.mxu0 0.0
        %856 = vmatpush1.msra.mxu0 0.0
        %857 = vmatprep.subr.mxu0 0.0
        %858 = vmatpush1.msra.mxu0 0.0
        %859 = vmatprep.subr.mxu0 0.0
        %860 = vmatpush1.msra.mxu0 0.0
        %861 = vmatprep.subr.mxu0 0.0
        %862 = vmatpush1.msra.mxu0 0.0
        %863 = vmatprep.subr.mxu0 0.0
        %864 = vmatpush1.msra.mxu0 0.0
        %865 = vmatprep.subr.mxu0 0.0
        %866 = vmatpush1.msra.mxu0 0.0
        %867 = vmatprep.subr.mxu0 0.0
        %868 = vmatpush1.msra.mxu0 0.0
        %869 = vmatprep.subr.mxu0 0.0
        %870 = vmatpush1.msra.mxu0 0.0
        %871 = vmatprep.subr.mxu0 0.0
        %872 = vmatpush1.msra.mxu0 0.0
        %873 = vmatprep.subr.mxu0 0.0
        %874 = vmatpush1.msra.mxu0 0.0
        %875 = vmatprep.subr.mxu0 0.0
        %876 = vmatpush1.msra.mxu0 0.0
        %877 = vmatprep.subr.mxu0 0.0
        %878 = vmatpush1.msra.mxu0 0.0
        %879 = vmatprep.subr.mxu0 0.0
        %880 = vmatpush1.msra.mxu0 0.0
        %881 = vmatprep.subr.mxu0 0.0
        %882 = vmatpush1.msra.mxu0 0.0
        %883 = vmatprep.subr.mxu0 0.0
        %884 = vmatpush1.msra.mxu0 0.0
        %885 = vmatprep.subr.mxu0 0.0
        %886 = vmatpush1.msra.mxu0 0.0
        %887 = vmatprep.subr.mxu0 0.0
        %888 = vmatpush1.msra.mxu0 0.0
        %889 = vmatprep.subr.mxu0 0.0
        %890 = vmatpush1.msra.mxu0 0.0
        %891 = vmatprep.subr.mxu0 0.0
        %892 = vmatpush1.msra.mxu0 0.0
        %893 = vmatprep.subr.mxu0 0.0
        %894 = vmatpush1.msra.mxu0 0.0
        %895 = vmatprep.subr.mxu0 0.0
        %896 = vmatpush1.msra.mxu0 0.0
        %897 = vmatprep.subr.mxu0 0.0
        %898 = vmatpush1.msra.mxu0 0.0
        %899 = vmatprep.subr.mxu0 0.0
        %900 = vmatpush1.msra.mxu0 0.0
        %901 = vmatprep.subr.mxu0 0.0
        %902 = vmatpush1.msra.mxu0 0.0
        %903 = vmatprep.subr.mxu0 0.0
        %904 = vmatpush1.msra.mxu0 0.0
        %905 = vmatprep.subr.mxu0 0.0
        %906 = vmatpush1.msra.mxu0 0.0
        %907 = vmatprep.subr.mxu0 0.0
        %908 = vmatpush1.msra.mxu0 0.0
        %909 = vmatprep.subr.mxu0 0.0
        %910 = vmatpush1.msra.mxu0 0.0
        %911 = vmatprep.mubr.f32.mxu0 0.0
        %912 = vmatmul.mubr.f32.gmra.mrb[0].mxu0 %v839
        %v913 = vpop.f32.mrb[0].mxu0
        %v914 = vadd.f32 0.0, %v913
        %v915 = vpop.f32.mrb[0].mxu0
        %v916 = vadd.f32 0.0, %v915
        %917 = vdwg.mxu0
        %v918 = vadd.f32 %v814, %v914
        %v919 = vadd.f32 %v815, %v916
        %920 = vrot.lane.b32.xlu0 %v304, 113
        %v921 = vpop.permute.xlu0 %920
        %922 = vrot.lane.b32.xlu0 %v317, 113
        %v923 = vpop.permute.xlu0 %922
        %vm924 = vcmp.lt.s32.totalorder %v324, 113
        %v925 = vsel %vm924, %v921, %v923
        %v926 = vsel %vm924, %v923, %v921
        %v927 = vsel %vm314, 1, 0
        %v928 = vlaneseq
        %v929 = vshrl.u32 %v928, 7
        %v930 = vsub.s32 0, %v929
        %v931 = vrot.slane %v927, %v930
        %v932 = vlaneseq
        %v933 = vshrl.u32 %v932, 7
        %v934 = vsub.s32 1, %v933
        %v935 = vrot.slane %v927, %v934
        %vm936 = vcmp.eq.s32.totalorder %v931, 1
        %vm937 = vcmp.eq.s32.totalorder %v935, 1
        %v938 = vsel %vm936, %v925, 0.0
        %v939 = vsel %vm937, %v926, 0.0
        %s940 = scalar_lea.vmem %s1, 24
        %v941 = vld [vmem:[%s940] sm:$0xf]
        %v943 = vsel %vm364, %v941, 0
        %v946 = vsel %vm368, %v938, 0
        %v949 = vsel %vm368, %v939, 0
        %951 = vmatprep.subr.mxu0 %v949
        %952 = vmatpush1.msra.mxu0 %v946
        %953 = vmatprep.subr.mxu0 0.0
        %954 = vmatpush1.msra.mxu0 0.0
        %955 = vmatprep.subr.mxu0 0.0
        %956 = vmatpush1.msra.mxu0 0.0
        %957 = vmatprep.subr.mxu0 0.0
        %958 = vmatpush1.msra.mxu0 0.0
        %959 = vmatprep.subr.mxu0 0.0
        %960 = vmatpush1.msra.mxu0 0.0
        %961 = vmatprep.subr.mxu0 0.0
        %962 = vmatpush1.msra.mxu0 0.0
        %963 = vmatprep.subr.mxu0 0.0
        %964 = vmatpush1.msra.mxu0 0.0
        %965 = vmatprep.subr.mxu0 0.0
        %966 = vmatpush1.msra.mxu0 0.0
        %967 = vmatprep.subr.mxu0 0.0
        %968 = vmatpush1.msra.mxu0 0.0
        %969 = vmatprep.subr.mxu0 0.0
        %970 = vmatpush1.msra.mxu0 0.0
        %971 = vmatprep.subr.mxu0 0.0
        %972 = vmatpush1.msra.mxu0 0.0
        %973 = vmatprep.subr.mxu0 0.0
        %974 = vmatpush1.msra.mxu0 0.0
        %975 = vmatprep.subr.mxu0 0.0
        %976 = vmatpush1.msra.mxu0 0.0
        %977 = vmatprep.subr.mxu0 0.0
        %978 = vmatpush1.msra.mxu0 0.0
        %979 = vmatprep.subr.mxu0 0.0
        %980 = vmatpush1.msra.mxu0 0.0
        %981 = vmatprep.subr.mxu0 0.0
        %982 = vmatpush1.msra.mxu0 0.0
        %983 = vmatprep.subr.mxu0 0.0
        %984 = vmatpush1.msra.mxu0 0.0
        %985 = vmatprep.subr.mxu0 0.0
        %986 = vmatpush1.msra.mxu0 0.0
        %987 = vmatprep.subr.mxu0 0.0
        %988 = vmatpush1.msra.mxu0 0.0
        %989 = vmatprep.subr.mxu0 0.0
        %990 = vmatpush1.msra.mxu0 0.0
        %991 = vmatprep.subr.mxu0 0.0
        %992 = vmatpush1.msra.mxu0 0.0
        %993 = vmatprep.subr.mxu0 0.0
        %994 = vmatpush1.msra.mxu0 0.0
        %995 = vmatprep.subr.mxu0 0.0
        %996 = vmatpush1.msra.mxu0 0.0
        %997 = vmatprep.subr.mxu0 0.0
        %998 = vmatpush1.msra.mxu0 0.0
        %999 = vmatprep.subr.mxu0 0.0
        %1000 = vmatpush1.msra.mxu0 0.0
        %1001 = vmatprep.subr.mxu0 0.0
        %1002 = vmatpush1.msra.mxu0 0.0
        %1003 = vmatprep.subr.mxu0 0.0
        %1004 = vmatpush1.msra.mxu0 0.0
        %1005 = vmatprep.subr.mxu0 0.0
        %1006 = vmatpush1.msra.mxu0 0.0
        %1007 = vmatprep.subr.mxu0 0.0
        %1008 = vmatpush1.msra.mxu0 0.0
        %1009 = vmatprep.subr.mxu0 0.0
        %1010 = vmatpush1.msra.mxu0 0.0
        %1011 = vmatprep.subr.mxu0 0.0
        %1012 = vmatpush1.msra.mxu0 0.0
        %1013 = vmatprep.subr.mxu0 0.0
        %1014 = vmatpush1.msra.mxu0 0.0
        %1015 = vmatprep.mubr.f32.mxu0 0.0
        %1016 = vmatmul.mubr.f32.gmra.mrb[0].mxu0 %v943
        %v1017 = vpop.f32.mrb[0].mxu0
        %v1018 = vadd.f32 0.0, %v1017
        %v1019 = vpop.f32.mrb[0].mxu0
        %v1020 = vadd.f32 0.0, %v1019
        %1021 = vdwg.mxu0
        %v1022 = vadd.f32 %v918, %v1018
        %v1023 = vadd.f32 %v919, %v1020
        %1024 = vrot.lane.b32.xlu0 %v304, 112
        %v1025 = vpop.permute.xlu0 %1024
        %1026 = vrot.lane.b32.xlu0 %v317, 112
        %v1027 = vpop.permute.xlu0 %1026
        %vm1028 = vcmp.lt.s32.totalorder %v324, 112
        %v1029 = vsel %vm1028, %v1025, %v1027
        %v1030 = vsel %vm1028, %v1027, %v1025
        %v1031 = vsel %vm313, 1, 0
        %v1032 = vlaneseq
        %v1033 = vshrl.u32 %v1032, 7
        %v1034 = vsub.s32 0, %v1033
        %v1035 = vrot.slane %v1031, %v1034
        %v1036 = vlaneseq
        %v1037 = vshrl.u32 %v1036, 7
        %v1038 = vsub.s32 1, %v1037
        %v1039 = vrot.slane %v1031, %v1038
        %vm1040 = vcmp.eq.s32.totalorder %v1035, 1
        %vm1041 = vcmp.eq.s32.totalorder %v1039, 1
        %v1042 = vsel %vm1040, %v1029, 0.0
        %v1043 = vsel %vm1041, %v1030, 0.0
        %s1044 = scalar_lea.vmem %s1, 28
        %v1045 = vld [vmem:[%s1044] sm:$0xf]
        %v1047 = vsel %vm364, %v1045, 0
        %v1050 = vsel %vm368, %v1042, 0
        %v1053 = vsel %vm368, %v1043, 0
        %1055 = vmatprep.subr.mxu0 %v1053
        %1056 = vmatpush1.msra.mxu0 %v1050
        %1057 = vmatprep.subr.mxu0 0.0
        %1058 = vmatpush1.msra.mxu0 0.0
        %1059 = vmatprep.subr.mxu0 0.0
        %1060 = vmatpush1.msra.mxu0 0.0
        %1061 = vmatprep.subr.mxu0 0.0
        %1062 = vmatpush1.msra.mxu0 0.0
        %1063 = vmatprep.subr.mxu0 0.0
        %1064 = vmatpush1.msra.mxu0 0.0
        %1065 = vmatprep.subr.mxu0 0.0
        %1066 = vmatpush1.msra.mxu0 0.0
        %1067 = vmatprep.subr.mxu0 0.0
        %1068 = vmatpush1.msra.mxu0 0.0
        %1069 = vmatprep.subr.mxu0 0.0
        %1070 = vmatpush1.msra.mxu0 0.0
        %1071 = vmatprep.subr.mxu0 0.0
        %1072 = vmatpush1.msra.mxu0 0.0
        %1073 = vmatprep.subr.mxu0 0.0
        %1074 = vmatpush1.msra.mxu0 0.0
        %1075 = vmatprep.subr.mxu0 0.0
        %1076 = vmatpush1.msra.mxu0 0.0
        %1077 = vmatprep.subr.mxu0 0.0
        %1078 = vmatpush1.msra.mxu0 0.0
        %1079 = vmatprep.subr.mxu0 0.0
        %1080 = vmatpush1.msra.mxu0 0.0
        %1081 = vmatprep.subr.mxu0 0.0
        %1082 = vmatpush1.msra.mxu0 0.0
        %1083 = vmatprep.subr.mxu0 0.0
        %1084 = vmatpush1.msra.mxu0 0.0
        %1085 = vmatprep.subr.mxu0 0.0
        %1086 = vmatpush1.msra.mxu0 0.0
        %1087 = vmatprep.subr.mxu0 0.0
        %1088 = vmatpush1.msra.mxu0 0.0
        %1089 = vmatprep.subr.mxu0 0.0
        %1090 = vmatpush1.msra.mxu0 0.0
        %1091 = vmatprep.subr.mxu0 0.0
        %1092 = vmatpush1.msra.mxu0 0.0
        %1093 = vmatprep.subr.mxu0 0.0
        %1094 = vmatpush1.msra.mxu0 0.0
        %1095 = vmatprep.subr.mxu0 0.0
        %1096 = vmatpush1.msra.mxu0 0.0
        %1097 = vmatprep.subr.mxu0 0.0
        %1098 = vmatpush1.msra.mxu0 0.0
        %1099 = vmatprep.subr.mxu0 0.0
        %1100 = vmatpush1.msra.mxu0 0.0
        %1101 = vmatprep.subr.mxu0 0.0
        %1102 = vmatpush1.msra.mxu0 0.0
        %1103 = vmatprep.subr.mxu0 0.0
        %1104 = vmatpush1.msra.mxu0 0.0
        %1105 = vmatprep.subr.mxu0 0.0
        %1106 = vmatpush1.msra.mxu0 0.0
        %1107 = vmatprep.subr.mxu0 0.0
        %1108 = vmatpush1.msra.mxu0 0.0
        %1109 = vmatprep.subr.mxu0 0.0
        %1110 = vmatpush1.msra.mxu0 0.0
        %1111 = vmatprep.subr.mxu0 0.0
        %1112 = vmatpush1.msra.mxu0 0.0
        %1113 = vmatprep.subr.mxu0 0.0
        %1114 = vmatpush1.msra.mxu0 0.0
        %1115 = vmatprep.subr.mxu0 0.0
        %1116 = vmatpush1.msra.mxu0 0.0
        %1117 = vmatprep.subr.mxu0 0.0
        %1118 = vmatpush1.msra.mxu0 0.0
        %1119 = vmatprep.mubr.f32.mxu0 0.0
        %1120 = vmatmul.mubr.f32.gmra.mrb[0].mxu0 %v1047
        %v1121 = vpop.f32.mrb[0].mxu0
        %v1122 = vadd.f32 0.0, %v1121
        %v1123 = vpop.f32.mrb[0].mxu0
        %v1124 = vadd.f32 0.0, %v1123
        %1125 = vdwg.mxu0
        %v1126 = vadd.f32 %v1022, %v1122
        %v1127 = vadd.f32 %v1023, %v1124
        %1128 = vrot.lane.b32.xlu0 %v304, 111
        %v1129 = vpop.permute.xlu0 %1128
        %1130 = vrot.lane.b32.xlu0 %v317, 111
        %v1131 = vpop.permute.xlu0 %1130
        %vm1132 = vcmp.lt.s32.totalorder %v324, 111
        %v1133 = vsel %vm1132, %v1129, %v1131
        %v1134 = vsel %vm1132, %v1131, %v1129
        %v1135 = vsel %vm315, 1, 0
        %v1136 = vlaneseq
        %v1137 = vshrl.u32 %v1136, 7
        %v1138 = vsub.s32 0, %v1137
        %v1139 = vrot.slane %v1135, %v1138
        %v1140 = vlaneseq
        %v1141 = vshrl.u32 %v1140, 7
        %v1142 = vsub.s32 1, %v1141
        %v1143 = vrot.slane %v1135, %v1142
        %vm1144 = vcmp.eq.s32.totalorder %v1139, 1
        %vm1145 = vcmp.eq.s32.totalorder %v1143, 1
        %v1146 = vsel %vm1144, %v1133, 0.0
        %v1147 = vsel %vm1145, %v1134, 0.0
        %s1148 = scalar_lea.vmem %s1, 32
        %v1149 = vld [vmem:[%s1148] sm:$0xf]
        %v1151 = vsel %vm364, %v1149, 0
        %v1154 = vsel %vm368, %v1146, 0
        %v1157 = vsel %vm368, %v1147, 0
        %1159 = vmatprep.subr.mxu0 %v1157
        %1160 = vmatpush1.msra.mxu0 %v1154
        %1161 = vmatprep.subr.mxu0 0.0
        %1162 = vmatpush1.msra.mxu0 0.0
        %1163 = vmatprep.subr.mxu0 0.0
        %1164 = vmatpush1.msra.mxu0 0.0
        %1165 = vmatprep.subr.mxu0 0.0
        %1166 = vmatpush1.msra.mxu0 0.0
        %1167 = vmatprep.subr.mxu0 0.0
        %1168 = vmatpush1.msra.mxu0 0.0
        %1169 = vmatprep.subr.mxu0 0.0
        %1170 = vmatpush1.msra.mxu0 0.0
        %1171 = vmatprep.subr.mxu0 0.0
        %1172 = vmatpush1.msra.mxu0 0.0
        %1173 = vmatprep.subr.mxu0 0.0
        %1174 = vmatpush1.msra.mxu0 0.0
        %1175 = vmatprep.subr.mxu0 0.0
        %1176 = vmatpush1.msra.mxu0 0.0
        %1177 = vmatprep.subr.mxu0 0.0
        %1178 = vmatpush1.msra.mxu0 0.0
        %1179 = vmatprep.subr.mxu0 0.0
        %1180 = vmatpush1.msra.mxu0 0.0
        %1181 = vmatprep.subr.mxu0 0.0
        %1182 = vmatpush1.msra.mxu0 0.0
        %1183 = vmatprep.subr.mxu0 0.0
        %1184 = vmatpush1.msra.mxu0 0.0
        %1185 = vmatprep.subr.mxu0 0.0
        %1186 = vmatpush1.msra.mxu0 0.0
        %1187 = vmatprep.subr.mxu0 0.0
        %1188 = vmatpush1.msra.mxu0 0.0
        %1189 = vmatprep.subr.mxu0 0.0
        %1190 = vmatpush1.msra.mxu0 0.0
        %1191 = vmatprep.subr.mxu0 0.0
        %1192 = vmatpush1.msra.mxu0 0.0
        %1193 = vmatprep.subr.mxu0 0.0
        %1194 = vmatpush1.msra.mxu0 0.0
        %1195 = vmatprep.subr.mxu0 0.0
        %1196 = vmatpush1.msra.mxu0 0.0
        %1197 = vmatprep.subr.mxu0 0.0
        %1198 = vmatpush1.msra.mxu0 0.0
        %1199 = vmatprep.subr.mxu0 0.0
        %1200 = vmatpush1.msra.mxu0 0.0
        %1201 = vmatprep.subr.mxu0 0.0
        %1202 = vmatpush1.msra.mxu0 0.0
        %1203 = vmatprep.subr.mxu0 0.0
        %1204 = vmatpush1.msra.mxu0 0.0
        %1205 = vmatprep.subr.mxu0 0.0
        %1206 = vmatpush1.msra.mxu0 0.0
        %1207 = vmatprep.subr.mxu0 0.0
        %1208 = vmatpush1.msra.mxu0 0.0
        %1209 = vmatprep.subr.mxu0 0.0
        %1210 = vmatpush1.msra.mxu0 0.0
        %1211 = vmatprep.subr.mxu0 0.0
        %1212 = vmatpush1.msra.mxu0 0.0
        %1213 = vmatprep.subr.mxu0 0.0
        %1214 = vmatpush1.msra.mxu0 0.0
        %1215 = vmatprep.subr.mxu0 0.0
        %1216 = vmatpush1.msra.mxu0 0.0
        %1217 = vmatprep.subr.mxu0 0.0
        %1218 = vmatpush1.msra.mxu0 0.0
        %1219 = vmatprep.subr.mxu0 0.0
        %1220 = vmatpush1.msra.mxu0 0.0
        %1221 = vmatprep.subr.mxu0 0.0
        %1222 = vmatpush1.msra.mxu0 0.0
        %1223 = vmatprep.mubr.f32.mxu0 0.0
        %1224 = vmatmul.mubr.f32.gmra.mrb[0].mxu0 %v1151
        %v1225 = vpop.f32.mrb[0].mxu0
        %v1226 = vadd.f32 0.0, %v1225
        %v1227 = vpop.f32.mrb[0].mxu0
        %v1228 = vadd.f32 0.0, %v1227
        %1229 = vdwg.mxu0
        %v1230 = vadd.f32 %v1126, %v1226
        %v1231 = vadd.f32 %v1127, %v1228
        %v1232 = vsel %vm368, %v1230, 0.0
        %v1233 = vsel %vm368, %v1231, 0.0
        %v1234 = vadd.f32 %v1232, %v1233
        %1235 = vadd.xlane.f32.xlu0 %v1234
        %v1236 = vpop.xlane.xlu0 %1235
        %v1237 = vrcp.pop 256.0
        %v1238 = vmul.f32 %v1236, %v1237
        %v1239 = vsub.f32 %v1230, %v1238
        %v1240 = vsub.f32 %v1231, %v1238
        %v1241 = vmul.f32 %v1239, %v1239
        %v1242 = vmul.f32 %v1240, %v1240
        %v1243 = vsel %vm368, %v1241, 0.0
        %v1244 = vsel %vm368, %v1242, 0.0
        %v1245 = vadd.f32 %v1243, %v1244
        %1246 = vadd.xlane.f32.xlu0 %v1245
        %v1247 = vpop.xlane.xlu0 %1246
        %v1248 = vmul.f32 %v1247, %v1237
        %v1249 = vld [vmem:[%s3] sm:$0xf]
        %v1250 = vadd.f32 %v1248, 1e-05
        %v1251 = vrsqrt.pop %v1250
        %v1252 = vmul.f32 %v1249, %v1251
        %1254 = vset.pattern.permute.xlu0 0
        %1255 = vperm.xlu0 %1254, %v1252
        %v1256 = vpop.permute.xlu0 %1255
        %v1258 = vmul.f32 %v1230, %v1256
        %v1259 = vmul.f32 %v1231, %v1256
        %v1260 = vld [vmem:[%s4] sm:$0xf]
        %v1261 = vmul.f32 %v1238, %v1252
        %v1262 = vsub.f32 %v1260, %v1261
        %1264 = vset.pattern.permute.xlu0 0
        %1265 = vperm.xlu0 %1264, %v1262
        %v1266 = vpop.permute.xlu0 %1265
        %v1268 = vadd.f32 %v1258, %v1266
        %v1269 = vadd.f32 %v1259, %v1266
        %v1270 = vmul.f32 %v1268, 0.1
        %v1271 = vmul.f32 %v1269, 0.1
        %v1272 = vmax.f32 %v1268, %v1270
        %v1273 = vmax.f32 %v1269, %v1271
        %1274 = vrot.lane.b32.xlu0 %v1272, 17
        %v1275 = vpop.permute.xlu0 %1274
        %1276 = vrot.lane.b32.xlu0 %v1273, 17
        %v1277 = vpop.permute.xlu0 %1276
        %v1278 = vsel %vm325, %v1275, %v1277
        %v1279 = vsel %vm325, %v1277, %v1275
        %v1280 = vsel %vm337, %v1279, 0.0
        %v1281 = vsel %vm338, %v1278, 0.0
        %v1282 = vld [vmem:[%s2] sm:$0xf]
        %1283 = vrot.lane.b32.xlu0 %v1272, 16
        %v1284 = vpop.permute.xlu0 %1283
        %1285 = vrot.lane.b32.xlu0 %v1273, 16
        %v1286 = vpop.permute.xlu0 %1285
        %v1287 = vsel %vm346, %v1284, %v1286
        %v1288 = vsel %vm346, %v1286, %v1284
        %v1289 = vsel %vm358, %v1288, 0.0
        %v1290 = vsel %vm359, %v1287, 0.0
        %s1291 = scalar_lea.vmem %s2, 4
        %v1292 = vld [vmem:[%s1291] sm:$0xf]
        %v1294 = vsel %vm364, %v1292, 0
        %v1297 = vsel %vm368, %v1289, 0
        %v1300 = vsel %vm368, %v1290, 0
        %1302 = vmatprep.subr.mxu0 %v1300
        %1303 = vmatpush1.msra.mxu0 %v1297
        %1304 = vmatprep.subr.mxu0 0.0
        %1305 = vmatpush1.msra.mxu0 0.0
        %1306 = vmatprep.subr.mxu0 0.0
        %1307 = vmatpush1.msra.mxu0 0.0
        %1308 = vmatprep.subr.mxu0 0.0
        %1309 = vmatpush1.msra.mxu0 0.0
        %1310 = vmatprep.subr.mxu0 0.0
        %1311 = vmatpush1.msra.mxu0 0.0
        %1312 = vmatprep.subr.mxu0 0.0
        %1313 = vmatpush1.msra.mxu0 0.0
        %1314 = vmatprep.subr.mxu0 0.0
        %1315 = vmatpush1.msra.mxu0 0.0
        %1316 = vmatprep.subr.mxu0 0.0
        %1317 = vmatpush1.msra.mxu0 0.0
        %1318 = vmatprep.subr.mxu0 0.0
        %1319 = vmatpush1.msra.mxu0 0.0
        %1320 = vmatprep.subr.mxu0 0.0
        %1321 = vmatpush1.msra.mxu0 0.0
        %1322 = vmatprep.subr.mxu0 0.0
        %1323 = vmatpush1.msra.mxu0 0.0
        %1324 = vmatprep.subr.mxu0 0.0
        %1325 = vmatpush1.msra.mxu0 0.0
        %1326 = vmatprep.subr.mxu0 0.0
        %1327 = vmatpush1.msra.mxu0 0.0
        %1328 = vmatprep.subr.mxu0 0.0
        %1329 = vmatpush1.msra.mxu0 0.0
        %1330 = vmatprep.subr.mxu0 0.0
        %1331 = vmatpush1.msra.mxu0 0.0
        %1332 = vmatprep.subr.mxu0 0.0
        %1333 = vmatpush1.msra.mxu0 0.0
        %1334 = vmatprep.subr.mxu0 0.0
        %1335 = vmatpush1.msra.mxu0 0.0
        %1336 = vmatprep.subr.mxu0 0.0
        %1337 = vmatpush1.msra.mxu0 0.0
        %1338 = vmatprep.subr.mxu0 0.0
        %1339 = vmatpush1.msra.mxu0 0.0
        %1340 = vmatprep.subr.mxu0 0.0
        %1341 = vmatpush1.msra.mxu0 0.0
        %1342 = vmatprep.subr.mxu0 0.0
        %1343 = vmatpush1.msra.mxu0 0.0
        %1344 = vmatprep.subr.mxu0 0.0
        %1345 = vmatpush1.msra.mxu0 0.0
        %1346 = vmatprep.subr.mxu0 0.0
        %1347 = vmatpush1.msra.mxu0 0.0
        %1348 = vmatprep.subr.mxu0 0.0
        %1349 = vmatpush1.msra.mxu0 0.0
        %1350 = vmatprep.subr.mxu0 0.0
        %1351 = vmatpush1.msra.mxu0 0.0
        %1352 = vmatprep.subr.mxu0 0.0
        %1353 = vmatpush1.msra.mxu0 0.0
        %1354 = vmatprep.subr.mxu0 0.0
        %1355 = vmatpush1.msra.mxu0 0.0
        %1356 = vmatprep.subr.mxu0 0.0
        %1357 = vmatpush1.msra.mxu0 0.0
        %1358 = vmatprep.subr.mxu0 0.0
        %1359 = vmatpush1.msra.mxu0 0.0
        %1360 = vmatprep.subr.mxu0 0.0
        %1361 = vmatpush1.msra.mxu0 0.0
        %1362 = vmatprep.subr.mxu0 0.0
        %1363 = vmatpush1.msra.mxu0 0.0
        %1364 = vmatprep.subr.mxu0 0.0
        %1365 = vmatpush1.msra.mxu0 0.0
        %1366 = vmatprep.mubr.f32.mxu0 0.0
        %1367 = vmatmul.mubr.f32.gmra.mrb[0].mxu0 %v1294
        %v1368 = vpop.f32.mrb[0].mxu0
        %v1369 = vadd.f32 0.0, %v1368
        %v1370 = vpop.f32.mrb[0].mxu0
        %v1371 = vadd.f32 0.0, %v1370
        %1372 = vdwg.mxu0
        %v1374 = vsel %vm364, %v1282, 0
        %v1377 = vsel %vm368, %v1280, 0
        %v1380 = vsel %vm368, %v1281, 0
        %1382 = vmatprep.subr.mxu0 %v1380
        %1383 = vmatpush1.msra.mxu0 %v1377
        %1384 = vmatprep.subr.mxu0 0.0
        %1385 = vmatpush1.msra.mxu0 0.0
        %1386 = vmatprep.subr.mxu0 0.0
        %1387 = vmatpush1.msra.mxu0 0.0
        %1388 = vmatprep.subr.mxu0 0.0
        %1389 = vmatpush1.msra.mxu0 0.0
        %1390 = vmatprep.subr.mxu0 0.0
        %1391 = vmatpush1.msra.mxu0 0.0
        %1392 = vmatprep.subr.mxu0 0.0
        %1393 = vmatpush1.msra.mxu0 0.0
        %1394 = vmatprep.subr.mxu0 0.0
        %1395 = vmatpush1.msra.mxu0 0.0
        %1396 = vmatprep.subr.mxu0 0.0
        %1397 = vmatpush1.msra.mxu0 0.0
        %1398 = vmatprep.subr.mxu0 0.0
        %1399 = vmatpush1.msra.mxu0 0.0
        %1400 = vmatprep.subr.mxu0 0.0
        %1401 = vmatpush1.msra.mxu0 0.0
        %1402 = vmatprep.subr.mxu0 0.0
        %1403 = vmatpush1.msra.mxu0 0.0
        %1404 = vmatprep.subr.mxu0 0.0
        %1405 = vmatpush1.msra.mxu0 0.0
        %1406 = vmatprep.subr.mxu0 0.0
        %1407 = vmatpush1.msra.mxu0 0.0
        %1408 = vmatprep.subr.mxu0 0.0
        %1409 = vmatpush1.msra.mxu0 0.0
        %1410 = vmatprep.subr.mxu0 0.0
        %1411 = vmatpush1.msra.mxu0 0.0
        %1412 = vmatprep.subr.mxu0 0.0
        %1413 = vmatpush1.msra.mxu0 0.0
        %1414 = vmatprep.subr.mxu0 0.0
        %1415 = vmatpush1.msra.mxu0 0.0
        %1416 = vmatprep.subr.mxu0 0.0
        %1417 = vmatpush1.msra.mxu0 0.0
        %1418 = vmatprep.subr.mxu0 0.0
        %1419 = vmatpush1.msra.mxu0 0.0
        %1420 = vmatprep.subr.mxu0 0.0
        %1421 = vmatpush1.msra.mxu0 0.0
        %1422 = vmatprep.subr.mxu0 0.0
        %1423 = vmatpush1.msra.mxu0 0.0
        %1424 = vmatprep.subr.mxu0 0.0
        %1425 = vmatpush1.msra.mxu0 0.0
        %1426 = vmatprep.subr.mxu0 0.0
        %1427 = vmatpush1.msra.mxu0 0.0
        %1428 = vmatprep.subr.mxu0 0.0
        %1429 = vmatpush1.msra.mxu0 0.0
        %1430 = vmatprep.subr.mxu0 0.0
        %1431 = vmatpush1.msra.mxu0 0.0
        %1432 = vmatprep.subr.mxu0 0.0
        %1433 = vmatpush1.msra.mxu0 0.0
        %1434 = vmatprep.subr.mxu0 0.0
        %1435 = vmatpush1.msra.mxu0 0.0
        %1436 = vmatprep.subr.mxu0 0.0
        %1437 = vmatpush1.msra.mxu0 0.0
        %1438 = vmatprep.subr.mxu0 0.0
        %1439 = vmatpush1.msra.mxu0 0.0
        %1440 = vmatprep.subr.mxu0 0.0
        %1441 = vmatpush1.msra.mxu0 0.0
        %1442 = vmatprep.subr.mxu0 0.0
        %1443 = vmatpush1.msra.mxu0 0.0
        %1444 = vmatprep.subr.mxu0 0.0
        %1445 = vmatpush1.msra.mxu0 0.0
        %1446 = vmatprep.mubr.f32.mxu0 0.0
        %1447 = vmatmul.mubr.f32.gmra.mrb[0].mxu0 %v1374
        %v1448 = vpop.f32.mrb[0].mxu0
        %v1449 = vadd.f32 %v1369, %v1448
        %v1450 = vpop.f32.mrb[0].mxu0
        %v1451 = vadd.f32 %v1371, %v1450
        %1452 = vdwg.mxu0
        %1453 = vrot.lane.b32.xlu0 %v1272, 15
        %v1454 = vpop.permute.xlu0 %1453
        %1455 = vrot.lane.b32.xlu0 %v1273, 15
        %v1456 = vpop.permute.xlu0 %1455
        %v1457 = vsel %vm530, %v1454, %v1456
        %v1458 = vsel %vm530, %v1456, %v1454
        %v1459 = vsel %vm542, %v1458, 0.0
        %v1460 = vsel %vm543, %v1457, 0.0
        %s1461 = scalar_lea.vmem %s2, 8
        %v1462 = vld [vmem:[%s1461] sm:$0xf]
        %v1464 = vsel %vm364, %v1462, 0
        %v1467 = vsel %vm368, %v1459, 0
        %v1470 = vsel %vm368, %v1460, 0
        %1472 = vmatprep.subr.mxu0 %v1470
        %1473 = vmatpush1.msra.mxu0 %v1467
        %1474 = vmatprep.subr.mxu0 0.0
        %1475 = vmatpush1.msra.mxu0 0.0
        %1476 = vmatprep.subr.mxu0 0.0
        %1477 = vmatpush1.msra.mxu0 0.0
        %1478 = vmatprep.subr.mxu0 0.0
        %1479 = vmatpush1.msra.mxu0 0.0
        %1480 = vmatprep.subr.mxu0 0.0
        %1481 = vmatpush1.msra.mxu0 0.0
        %1482 = vmatprep.subr.mxu0 0.0
        %1483 = vmatpush1.msra.mxu0 0.0
        %1484 = vmatprep.subr.mxu0 0.0
        %1485 = vmatpush1.msra.mxu0 0.0
        %1486 = vmatprep.subr.mxu0 0.0
        %1487 = vmatpush1.msra.mxu0 0.0
        %1488 = vmatprep.subr.mxu0 0.0
        %1489 = vmatpush1.msra.mxu0 0.0
        %1490 = vmatprep.subr.mxu0 0.0
        %1491 = vmatpush1.msra.mxu0 0.0
        %1492 = vmatprep.subr.mxu0 0.0
        %1493 = vmatpush1.msra.mxu0 0.0
        %1494 = vmatprep.subr.mxu0 0.0
        %1495 = vmatpush1.msra.mxu0 0.0
        %1496 = vmatprep.subr.mxu0 0.0
        %1497 = vmatpush1.msra.mxu0 0.0
        %1498 = vmatprep.subr.mxu0 0.0
        %1499 = vmatpush1.msra.mxu0 0.0
        %1500 = vmatprep.subr.mxu0 0.0
        %1501 = vmatpush1.msra.mxu0 0.0
        %1502 = vmatprep.subr.mxu0 0.0
        %1503 = vmatpush1.msra.mxu0 0.0
        %1504 = vmatprep.subr.mxu0 0.0
        %1505 = vmatpush1.msra.mxu0 0.0
        %1506 = vmatprep.subr.mxu0 0.0
        %1507 = vmatpush1.msra.mxu0 0.0
        %1508 = vmatprep.subr.mxu0 0.0
        %1509 = vmatpush1.msra.mxu0 0.0
        %1510 = vmatprep.subr.mxu0 0.0
        %1511 = vmatpush1.msra.mxu0 0.0
        %1512 = vmatprep.subr.mxu0 0.0
        %1513 = vmatpush1.msra.mxu0 0.0
        %1514 = vmatprep.subr.mxu0 0.0
        %1515 = vmatpush1.msra.mxu0 0.0
        %1516 = vmatprep.subr.mxu0 0.0
        %1517 = vmatpush1.msra.mxu0 0.0
        %1518 = vmatprep.subr.mxu0 0.0
        %1519 = vmatpush1.msra.mxu0 0.0
        %1520 = vmatprep.subr.mxu0 0.0
        %1521 = vmatpush1.msra.mxu0 0.0
        %1522 = vmatprep.subr.mxu0 0.0
        %1523 = vmatpush1.msra.mxu0 0.0
        %1524 = vmatprep.subr.mxu0 0.0
        %1525 = vmatpush1.msra.mxu0 0.0
        %1526 = vmatprep.subr.mxu0 0.0
        %1527 = vmatpush1.msra.mxu0 0.0
        %1528 = vmatprep.subr.mxu0 0.0
        %1529 = vmatpush1.msra.mxu0 0.0
        %1530 = vmatprep.subr.mxu0 0.0
        %1531 = vmatpush1.msra.mxu0 0.0
        %1532 = vmatprep.subr.mxu0 0.0
        %1533 = vmatpush1.msra.mxu0 0.0
        %1534 = vmatprep.subr.mxu0 0.0
        %1535 = vmatpush1.msra.mxu0 0.0
        %1536 = vmatprep.mubr.f32.mxu0 0.0
        %1537 = vmatmul.mubr.f32.gmra.mrb[0].mxu0 %v1464
        %v1538 = vpop.f32.mrb[0].mxu0
        %v1539 = vadd.f32 0.0, %v1538
        %v1540 = vpop.f32.mrb[0].mxu0
        %v1541 = vadd.f32 0.0, %v1540
        %1542 = vdwg.mxu0
        %v1543 = vadd.f32 %v1449, %v1539
        %v1544 = vadd.f32 %v1451, %v1541
        %1545 = vrot.lane.b32.xlu0 %v1272, 1
        %v1546 = vpop.permute.xlu0 %1545
        %1547 = vrot.lane.b32.xlu0 %v1273, 1
        %v1548 = vpop.permute.xlu0 %1547
        %v1549 = vsel %vm634, %v1546, %v1548
        %v1550 = vsel %vm634, %v1548, %v1546
        %v1551 = vsel %vm646, %v1550, 0.0
        %v1552 = vsel %vm647, %v1549, 0.0
        %s1553 = scalar_lea.vmem %s2, 12
        %v1554 = vld [vmem:[%s1553] sm:$0xf]
        %v1556 = vsel %vm364, %v1554, 0
        %v1559 = vsel %vm368, %v1551, 0
        %v1562 = vsel %vm368, %v1552, 0
        %1564 = vmatprep.subr.mxu0 %v1562
        %1565 = vmatpush1.msra.mxu0 %v1559
        %1566 = vmatprep.subr.mxu0 0.0
        %1567 = vmatpush1.msra.mxu0 0.0
        %1568 = vmatprep.subr.mxu0 0.0
        %1569 = vmatpush1.msra.mxu0 0.0
        %1570 = vmatprep.subr.mxu0 0.0
        %1571 = vmatpush1.msra.mxu0 0.0
        %1572 = vmatprep.subr.mxu0 0.0
        %1573 = vmatpush1.msra.mxu0 0.0
        %1574 = vmatprep.subr.mxu0 0.0
        %1575 = vmatpush1.msra.mxu0 0.0
        %1576 = vmatprep.subr.mxu0 0.0
        %1577 = vmatpush1.msra.mxu0 0.0
        %1578 = vmatprep.subr.mxu0 0.0
        %1579 = vmatpush1.msra.mxu0 0.0
        %1580 = vmatprep.subr.mxu0 0.0
        %1581 = vmatpush1.msra.mxu0 0.0
        %1582 = vmatprep.subr.mxu0 0.0
        %1583 = vmatpush1.msra.mxu0 0.0
        %1584 = vmatprep.subr.mxu0 0.0
        %1585 = vmatpush1.msra.mxu0 0.0
        %1586 = vmatprep.subr.mxu0 0.0
        %1587 = vmatpush1.msra.mxu0 0.0
        %1588 = vmatprep.subr.mxu0 0.0
        %1589 = vmatpush1.msra.mxu0 0.0
        %1590 = vmatprep.subr.mxu0 0.0
        %1591 = vmatpush1.msra.mxu0 0.0
        %1592 = vmatprep.subr.mxu0 0.0
        %1593 = vmatpush1.msra.mxu0 0.0
        %1594 = vmatprep.subr.mxu0 0.0
        %1595 = vmatpush1.msra.mxu0 0.0
        %1596 = vmatprep.subr.mxu0 0.0
        %1597 = vmatpush1.msra.mxu0 0.0
        %1598 = vmatprep.subr.mxu0 0.0
        %1599 = vmatpush1.msra.mxu0 0.0
        %1600 = vmatprep.subr.mxu0 0.0
        %1601 = vmatpush1.msra.mxu0 0.0
        %1602 = vmatprep.subr.mxu0 0.0
        %1603 = vmatpush1.msra.mxu0 0.0
        %1604 = vmatprep.subr.mxu0 0.0
        %1605 = vmatpush1.msra.mxu0 0.0
        %1606 = vmatprep.subr.mxu0 0.0
        %1607 = vmatpush1.msra.mxu0 0.0
        %1608 = vmatprep.subr.mxu0 0.0
        %1609 = vmatpush1.msra.mxu0 0.0
        %1610 = vmatprep.subr.mxu0 0.0
        %1611 = vmatpush1.msra.mxu0 0.0
        %1612 = vmatprep.subr.mxu0 0.0
        %1613 = vmatpush1.msra.mxu0 0.0
        %1614 = vmatprep.subr.mxu0 0.0
        %1615 = vmatpush1.msra.mxu0 0.0
        %1616 = vmatprep.subr.mxu0 0.0
        %1617 = vmatpush1.msra.mxu0 0.0
        %1618 = vmatprep.subr.mxu0 0.0
        %1619 = vmatpush1.msra.mxu0 0.0
        %1620 = vmatprep.subr.mxu0 0.0
        %1621 = vmatpush1.msra.mxu0 0.0
        %1622 = vmatprep.subr.mxu0 0.0
        %1623 = vmatpush1.msra.mxu0 0.0
        %1624 = vmatprep.subr.mxu0 0.0
        %1625 = vmatpush1.msra.mxu0 0.0
        %1626 = vmatprep.subr.mxu0 0.0
        %1627 = vmatpush1.msra.mxu0 0.0
        %1628 = vmatprep.mubr.f32.mxu0 0.0
        %1629 = vmatmul.mubr.f32.gmra.mrb[0].mxu0 %v1556
        %v1630 = vpop.f32.mrb[0].mxu0
        %v1631 = vadd.f32 0.0, %v1630
        %v1632 = vpop.f32.mrb[0].mxu0
        %v1633 = vadd.f32 0.0, %v1632
        %1634 = vdwg.mxu0
        %v1635 = vadd.f32 %v1543, %v1631
        %v1636 = vadd.f32 %v1544, %v1633
        %s1637 = scalar_lea.vmem %s2, 16
        %v1638 = vld [vmem:[%s1637] sm:$0xf]
        %v1640 = vsel %vm364, %v1638, 0
        %v1643 = vsel %vm368, %v1272, 0
        %v1646 = vsel %vm368, %v1273, 0
        %1648 = vmatprep.subr.mxu0 %v1646
        %1649 = vmatpush1.msra.mxu0 %v1643
        %1650 = vmatprep.subr.mxu0 0.0
        %1651 = vmatpush1.msra.mxu0 0.0
        %1652 = vmatprep.subr.mxu0 0.0
        %1653 = vmatpush1.msra.mxu0 0.0
        %1654 = vmatprep.subr.mxu0 0.0
        %1655 = vmatpush1.msra.mxu0 0.0
        %1656 = vmatprep.subr.mxu0 0.0
        %1657 = vmatpush1.msra.mxu0 0.0
        %1658 = vmatprep.subr.mxu0 0.0
        %1659 = vmatpush1.msra.mxu0 0.0
        %1660 = vmatprep.subr.mxu0 0.0
        %1661 = vmatpush1.msra.mxu0 0.0
        %1662 = vmatprep.subr.mxu0 0.0
        %1663 = vmatpush1.msra.mxu0 0.0
        %1664 = vmatprep.subr.mxu0 0.0
        %1665 = vmatpush1.msra.mxu0 0.0
        %1666 = vmatprep.subr.mxu0 0.0
        %1667 = vmatpush1.msra.mxu0 0.0
        %1668 = vmatprep.subr.mxu0 0.0
        %1669 = vmatpush1.msra.mxu0 0.0
        %1670 = vmatprep.subr.mxu0 0.0
        %1671 = vmatpush1.msra.mxu0 0.0
        %1672 = vmatprep.subr.mxu0 0.0
        %1673 = vmatpush1.msra.mxu0 0.0
        %1674 = vmatprep.subr.mxu0 0.0
        %1675 = vmatpush1.msra.mxu0 0.0
        %1676 = vmatprep.subr.mxu0 0.0
        %1677 = vmatpush1.msra.mxu0 0.0
        %1678 = vmatprep.subr.mxu0 0.0
        %1679 = vmatpush1.msra.mxu0 0.0
        %1680 = vmatprep.subr.mxu0 0.0
        %1681 = vmatpush1.msra.mxu0 0.0
        %1682 = vmatprep.subr.mxu0 0.0
        %1683 = vmatpush1.msra.mxu0 0.0
        %1684 = vmatprep.subr.mxu0 0.0
        %1685 = vmatpush1.msra.mxu0 0.0
        %1686 = vmatprep.subr.mxu0 0.0
        %1687 = vmatpush1.msra.mxu0 0.0
        %1688 = vmatprep.subr.mxu0 0.0
        %1689 = vmatpush1.msra.mxu0 0.0
        %1690 = vmatprep.subr.mxu0 0.0
        %1691 = vmatpush1.msra.mxu0 0.0
        %1692 = vmatprep.subr.mxu0 0.0
        %1693 = vmatpush1.msra.mxu0 0.0
        %1694 = vmatprep.subr.mxu0 0.0
        %1695 = vmatpush1.msra.mxu0 0.0
        %1696 = vmatprep.subr.mxu0 0.0
        %1697 = vmatpush1.msra.mxu0 0.0
        %1698 = vmatprep.subr.mxu0 0.0
        %1699 = vmatpush1.msra.mxu0 0.0
        %1700 = vmatprep.subr.mxu0 0.0
        %1701 = vmatpush1.msra.mxu0 0.0
        %1702 = vmatprep.subr.mxu0 0.0
        %1703 = vmatpush1.msra.mxu0 0.0
        %1704 = vmatprep.subr.mxu0 0.0
        %1705 = vmatpush1.msra.mxu0 0.0
        %1706 = vmatprep.subr.mxu0 0.0
        %1707 = vmatpush1.msra.mxu0 0.0
        %1708 = vmatprep.subr.mxu0 0.0
        %1709 = vmatpush1.msra.mxu0 0.0
        %1710 = vmatprep.subr.mxu0 0.0
        %1711 = vmatpush1.msra.mxu0 0.0
        %1712 = vmatprep.mubr.f32.mxu0 0.0
        %1713 = vmatmul.mubr.f32.gmra.mrb[0].mxu0 %v1640
        %v1714 = vpop.f32.mrb[0].mxu0
        %v1715 = vadd.f32 0.0, %v1714
        %v1716 = vpop.f32.mrb[0].mxu0
        %v1717 = vadd.f32 0.0, %v1716
        %1718 = vdwg.mxu0
        %v1719 = vadd.f32 %v1635, %v1715
        %v1720 = vadd.f32 %v1636, %v1717
        %1721 = vrot.lane.b32.xlu0 %v1272, 127
        %v1722 = vpop.permute.xlu0 %1721
        %1723 = vrot.lane.b32.xlu0 %v1273, 127
        %v1724 = vpop.permute.xlu0 %1723
        %v1725 = vsel %vm820, %v1722, %v1724
        %v1726 = vsel %vm820, %v1724, %v1722
        %v1727 = vsel %vm832, %v1725, 0.0
        %v1728 = vsel %vm833, %v1726, 0.0
        %s1729 = scalar_lea.vmem %s2, 20
        %v1730 = vld [vmem:[%s1729] sm:$0xf]
        %v1732 = vsel %vm364, %v1730, 0
        %v1735 = vsel %vm368, %v1727, 0
        %v1738 = vsel %vm368, %v1728, 0
        %1740 = vmatprep.subr.mxu0 %v1738
        %1741 = vmatpush1.msra.mxu0 %v1735
        %1742 = vmatprep.subr.mxu0 0.0
        %1743 = vmatpush1.msra.mxu0 0.0
        %1744 = vmatprep.subr.mxu0 0.0
        %1745 = vmatpush1.msra.mxu0 0.0
        %1746 = vmatprep.subr.mxu0 0.0
        %1747 = vmatpush1.msra.mxu0 0.0
        %1748 = vmatprep.subr.mxu0 0.0
        %1749 = vmatpush1.msra.mxu0 0.0
        %1750 = vmatprep.subr.mxu0 0.0
        %1751 = vmatpush1.msra.mxu0 0.0
        %1752 = vmatprep.subr.mxu0 0.0
        %1753 = vmatpush1.msra.mxu0 0.0
        %1754 = vmatprep.subr.mxu0 0.0
        %1755 = vmatpush1.msra.mxu0 0.0
        %1756 = vmatprep.subr.mxu0 0.0
        %1757 = vmatpush1.msra.mxu0 0.0
        %1758 = vmatprep.subr.mxu0 0.0
        %1759 = vmatpush1.msra.mxu0 0.0
        %1760 = vmatprep.subr.mxu0 0.0
        %1761 = vmatpush1.msra.mxu0 0.0
        %1762 = vmatprep.subr.mxu0 0.0
        %1763 = vmatpush1.msra.mxu0 0.0
        %1764 = vmatprep.subr.mxu0 0.0
        %1765 = vmatpush1.msra.mxu0 0.0
        %1766 = vmatprep.subr.mxu0 0.0
        %1767 = vmatpush1.msra.mxu0 0.0
        %1768 = vmatprep.subr.mxu0 0.0
        %1769 = vmatpush1.msra.mxu0 0.0
        %1770 = vmatprep.subr.mxu0 0.0
        %1771 = vmatpush1.msra.mxu0 0.0
        %1772 = vmatprep.subr.mxu0 0.0
        %1773 = vmatpush1.msra.mxu0 0.0
        %1774 = vmatprep.subr.mxu0 0.0
        %1775 = vmatpush1.msra.mxu0 0.0
        %1776 = vmatprep.subr.mxu0 0.0
        %1777 = vmatpush1.msra.mxu0 0.0
        %1778 = vmatprep.subr.mxu0 0.0
        %1779 = vmatpush1.msra.mxu0 0.0
        %1780 = vmatprep.subr.mxu0 0.0
        %1781 = vmatpush1.msra.mxu0 0.0
        %1782 = vmatprep.subr.mxu0 0.0
        %1783 = vmatpush1.msra.mxu0 0.0
        %1784 = vmatprep.subr.mxu0 0.0
        %1785 = vmatpush1.msra.mxu0 0.0
        %1786 = vmatprep.subr.mxu0 0.0
        %1787 = vmatpush1.msra.mxu0 0.0
        %1788 = vmatprep.subr.mxu0 0.0
        %1789 = vmatpush1.msra.mxu0 0.0
        %1790 = vmatprep.subr.mxu0 0.0
        %1791 = vmatpush1.msra.mxu0 0.0
        %1792 = vmatprep.subr.mxu0 0.0
        %1793 = vmatpush1.msra.mxu0 0.0
        %1794 = vmatprep.subr.mxu0 0.0
        %1795 = vmatpush1.msra.mxu0 0.0
        %1796 = vmatprep.subr.mxu0 0.0
        %1797 = vmatpush1.msra.mxu0 0.0
        %1798 = vmatprep.subr.mxu0 0.0
        %1799 = vmatpush1.msra.mxu0 0.0
        %1800 = vmatprep.subr.mxu0 0.0
        %1801 = vmatpush1.msra.mxu0 0.0
        %1802 = vmatprep.subr.mxu0 0.0
        %1803 = vmatpush1.msra.mxu0 0.0
        %1804 = vmatprep.mubr.f32.mxu0 0.0
        %1805 = vmatmul.mubr.f32.gmra.mrb[0].mxu0 %v1732
        %v1806 = vpop.f32.mrb[0].mxu0
        %v1807 = vadd.f32 0.0, %v1806
        %v1808 = vpop.f32.mrb[0].mxu0
        %v1809 = vadd.f32 0.0, %v1808
        %1810 = vdwg.mxu0
        %v1811 = vadd.f32 %v1719, %v1807
        %v1812 = vadd.f32 %v1720, %v1809
        %1813 = vrot.lane.b32.xlu0 %v1272, 113
        %v1814 = vpop.permute.xlu0 %1813
        %1815 = vrot.lane.b32.xlu0 %v1273, 113
        %v1816 = vpop.permute.xlu0 %1815
        %v1817 = vsel %vm924, %v1814, %v1816
        %v1818 = vsel %vm924, %v1816, %v1814
        %v1819 = vsel %vm936, %v1817, 0.0
        %v1820 = vsel %vm937, %v1818, 0.0
        %s1821 = scalar_lea.vmem %s2, 24
        %v1822 = vld [vmem:[%s1821] sm:$0xf]
        %v1824 = vsel %vm364, %v1822, 0
        %v1827 = vsel %vm368, %v1819, 0
        %v1830 = vsel %vm368, %v1820, 0
        %1832 = vmatprep.subr.mxu0 %v1830
        %1833 = vmatpush1.msra.mxu0 %v1827
        %1834 = vmatprep.subr.mxu0 0.0
        %1835 = vmatpush1.msra.mxu0 0.0
        %1836 = vmatprep.subr.mxu0 0.0
        %1837 = vmatpush1.msra.mxu0 0.0
        %1838 = vmatprep.subr.mxu0 0.0
        %1839 = vmatpush1.msra.mxu0 0.0
        %1840 = vmatprep.subr.mxu0 0.0
        %1841 = vmatpush1.msra.mxu0 0.0
        %1842 = vmatprep.subr.mxu0 0.0
        %1843 = vmatpush1.msra.mxu0 0.0
        %1844 = vmatprep.subr.mxu0 0.0
        %1845 = vmatpush1.msra.mxu0 0.0
        %1846 = vmatprep.subr.mxu0 0.0
        %1847 = vmatpush1.msra.mxu0 0.0
        %1848 = vmatprep.subr.mxu0 0.0
        %1849 = vmatpush1.msra.mxu0 0.0
        %1850 = vmatprep.subr.mxu0 0.0
        %1851 = vmatpush1.msra.mxu0 0.0
        %1852 = vmatprep.subr.mxu0 0.0
        %1853 = vmatpush1.msra.mxu0 0.0
        %1854 = vmatprep.subr.mxu0 0.0
        %1855 = vmatpush1.msra.mxu0 0.0
        %1856 = vmatprep.subr.mxu0 0.0
        %1857 = vmatpush1.msra.mxu0 0.0
        %1858 = vmatprep.subr.mxu0 0.0
        %1859 = vmatpush1.msra.mxu0 0.0
        %1860 = vmatprep.subr.mxu0 0.0
        %1861 = vmatpush1.msra.mxu0 0.0
        %1862 = vmatprep.subr.mxu0 0.0
        %1863 = vmatpush1.msra.mxu0 0.0
        %1864 = vmatprep.subr.mxu0 0.0
        %1865 = vmatpush1.msra.mxu0 0.0
        %1866 = vmatprep.subr.mxu0 0.0
        %1867 = vmatpush1.msra.mxu0 0.0
        %1868 = vmatprep.subr.mxu0 0.0
        %1869 = vmatpush1.msra.mxu0 0.0
        %1870 = vmatprep.subr.mxu0 0.0
        %1871 = vmatpush1.msra.mxu0 0.0
        %1872 = vmatprep.subr.mxu0 0.0
        %1873 = vmatpush1.msra.mxu0 0.0
        %1874 = vmatprep.subr.mxu0 0.0
        %1875 = vmatpush1.msra.mxu0 0.0
        %1876 = vmatprep.subr.mxu0 0.0
        %1877 = vmatpush1.msra.mxu0 0.0
        %1878 = vmatprep.subr.mxu0 0.0
        %1879 = vmatpush1.msra.mxu0 0.0
        %1880 = vmatprep.subr.mxu0 0.0
        %1881 = vmatpush1.msra.mxu0 0.0
        %1882 = vmatprep.subr.mxu0 0.0
        %1883 = vmatpush1.msra.mxu0 0.0
        %1884 = vmatprep.subr.mxu0 0.0
        %1885 = vmatpush1.msra.mxu0 0.0
        %1886 = vmatprep.subr.mxu0 0.0
        %1887 = vmatpush1.msra.mxu0 0.0
        %1888 = vmatprep.subr.mxu0 0.0
        %1889 = vmatpush1.msra.mxu0 0.0
        %1890 = vmatprep.subr.mxu0 0.0
        %1891 = vmatpush1.msra.mxu0 0.0
        %1892 = vmatprep.subr.mxu0 0.0
        %1893 = vmatpush1.msra.mxu0 0.0
        %1894 = vmatprep.subr.mxu0 0.0
        %1895 = vmatpush1.msra.mxu0 0.0
        %1896 = vmatprep.mubr.f32.mxu0 0.0
        %1897 = vmatmul.mubr.f32.gmra.mrb[0].mxu0 %v1824
        %v1898 = vpop.f32.mrb[0].mxu0
        %v1899 = vadd.f32 0.0, %v1898
        %v1900 = vpop.f32.mrb[0].mxu0
        %v1901 = vadd.f32 0.0, %v1900
        %1902 = vdwg.mxu0
        %v1903 = vadd.f32 %v1811, %v1899
        %v1904 = vadd.f32 %v1812, %v1901
        %1905 = vrot.lane.b32.xlu0 %v1272, 112
        %v1906 = vpop.permute.xlu0 %1905
        %1907 = vrot.lane.b32.xlu0 %v1273, 112
        %v1908 = vpop.permute.xlu0 %1907
        %v1909 = vsel %vm1028, %v1906, %v1908
        %v1910 = vsel %vm1028, %v1908, %v1906
        %v1911 = vsel %vm1040, %v1909, 0.0
        %v1912 = vsel %vm1041, %v1910, 0.0
        %s1913 = scalar_lea.vmem %s2, 28
        %v1914 = vld [vmem:[%s1913] sm:$0xf]
        %v1916 = vsel %vm364, %v1914, 0
        %v1919 = vsel %vm368, %v1911, 0
        %v1922 = vsel %vm368, %v1912, 0
        %1924 = vmatprep.subr.mxu0 %v1922
        %1925 = vmatpush1.msra.mxu0 %v1919
        %1926 = vmatprep.subr.mxu0 0.0
        %1927 = vmatpush1.msra.mxu0 0.0
        %1928 = vmatprep.subr.mxu0 0.0
        %1929 = vmatpush1.msra.mxu0 0.0
        %1930 = vmatprep.subr.mxu0 0.0
        %1931 = vmatpush1.msra.mxu0 0.0
        %1932 = vmatprep.subr.mxu0 0.0
        %1933 = vmatpush1.msra.mxu0 0.0
        %1934 = vmatprep.subr.mxu0 0.0
        %1935 = vmatpush1.msra.mxu0 0.0
        %1936 = vmatprep.subr.mxu0 0.0
        %1937 = vmatpush1.msra.mxu0 0.0
        %1938 = vmatprep.subr.mxu0 0.0
        %1939 = vmatpush1.msra.mxu0 0.0
        %1940 = vmatprep.subr.mxu0 0.0
        %1941 = vmatpush1.msra.mxu0 0.0
        %1942 = vmatprep.subr.mxu0 0.0
        %1943 = vmatpush1.msra.mxu0 0.0
        %1944 = vmatprep.subr.mxu0 0.0
        %1945 = vmatpush1.msra.mxu0 0.0
        %1946 = vmatprep.subr.mxu0 0.0
        %1947 = vmatpush1.msra.mxu0 0.0
        %1948 = vmatprep.subr.mxu0 0.0
        %1949 = vmatpush1.msra.mxu0 0.0
        %1950 = vmatprep.subr.mxu0 0.0
        %1951 = vmatpush1.msra.mxu0 0.0
        %1952 = vmatprep.subr.mxu0 0.0
        %1953 = vmatpush1.msra.mxu0 0.0
        %1954 = vmatprep.subr.mxu0 0.0
        %1955 = vmatpush1.msra.mxu0 0.0
        %1956 = vmatprep.subr.mxu0 0.0
        %1957 = vmatpush1.msra.mxu0 0.0
        %1958 = vmatprep.subr.mxu0 0.0
        %1959 = vmatpush1.msra.mxu0 0.0
        %1960 = vmatprep.subr.mxu0 0.0
        %1961 = vmatpush1.msra.mxu0 0.0
        %1962 = vmatprep.subr.mxu0 0.0
        %1963 = vmatpush1.msra.mxu0 0.0
        %1964 = vmatprep.subr.mxu0 0.0
        %1965 = vmatpush1.msra.mxu0 0.0
        %1966 = vmatprep.subr.mxu0 0.0
        %1967 = vmatpush1.msra.mxu0 0.0
        %1968 = vmatprep.subr.mxu0 0.0
        %1969 = vmatpush1.msra.mxu0 0.0
        %1970 = vmatprep.subr.mxu0 0.0
        %1971 = vmatpush1.msra.mxu0 0.0
        %1972 = vmatprep.subr.mxu0 0.0
        %1973 = vmatpush1.msra.mxu0 0.0
        %1974 = vmatprep.subr.mxu0 0.0
        %1975 = vmatpush1.msra.mxu0 0.0
        %1976 = vmatprep.subr.mxu0 0.0
        %1977 = vmatpush1.msra.mxu0 0.0
        %1978 = vmatprep.subr.mxu0 0.0
        %1979 = vmatpush1.msra.mxu0 0.0
        %1980 = vmatprep.subr.mxu0 0.0
        %1981 = vmatpush1.msra.mxu0 0.0
        %1982 = vmatprep.subr.mxu0 0.0
        %1983 = vmatpush1.msra.mxu0 0.0
        %1984 = vmatprep.subr.mxu0 0.0
        %1985 = vmatpush1.msra.mxu0 0.0
        %1986 = vmatprep.subr.mxu0 0.0
        %1987 = vmatpush1.msra.mxu0 0.0
        %1988 = vmatprep.mubr.f32.mxu0 0.0
        %1989 = vmatmul.mubr.f32.gmra.mrb[0].mxu0 %v1916
        %v1990 = vpop.f32.mrb[0].mxu0
        %v1991 = vadd.f32 0.0, %v1990
        %v1992 = vpop.f32.mrb[0].mxu0
        %v1993 = vadd.f32 0.0, %v1992
        %1994 = vdwg.mxu0
        %v1995 = vadd.f32 %v1903, %v1991
        %v1996 = vadd.f32 %v1904, %v1993
        %1997 = vrot.lane.b32.xlu0 %v1272, 111
        %v1998 = vpop.permute.xlu0 %1997
        %1999 = vrot.lane.b32.xlu0 %v1273, 111
        %v2000 = vpop.permute.xlu0 %1999
        %v2001 = vsel %vm1132, %v1998, %v2000
        %v2002 = vsel %vm1132, %v2000, %v1998
        %v2003 = vsel %vm1144, %v2001, 0.0
        %v2004 = vsel %vm1145, %v2002, 0.0
        %s2005 = scalar_lea.vmem %s2, 32
        %v2006 = vld [vmem:[%s2005] sm:$0xf]
        %v2008 = vsel %vm364, %v2006, 0
        %v2011 = vsel %vm368, %v2003, 0
        %v2014 = vsel %vm368, %v2004, 0
        %2016 = vmatprep.subr.mxu0 %v2014
        %2017 = vmatpush1.msra.mxu0 %v2011
        %2018 = vmatprep.subr.mxu0 0.0
        %2019 = vmatpush1.msra.mxu0 0.0
        %2020 = vmatprep.subr.mxu0 0.0
        %2021 = vmatpush1.msra.mxu0 0.0
        %2022 = vmatprep.subr.mxu0 0.0
        %2023 = vmatpush1.msra.mxu0 0.0
        %2024 = vmatprep.subr.mxu0 0.0
        %2025 = vmatpush1.msra.mxu0 0.0
        %2026 = vmatprep.subr.mxu0 0.0
        %2027 = vmatpush1.msra.mxu0 0.0
        %2028 = vmatprep.subr.mxu0 0.0
        %2029 = vmatpush1.msra.mxu0 0.0
        %2030 = vmatprep.subr.mxu0 0.0
        %2031 = vmatpush1.msra.mxu0 0.0
        %2032 = vmatprep.subr.mxu0 0.0
        %2033 = vmatpush1.msra.mxu0 0.0
        %2034 = vmatprep.subr.mxu0 0.0
        %2035 = vmatpush1.msra.mxu0 0.0
        %2036 = vmatprep.subr.mxu0 0.0
        %2037 = vmatpush1.msra.mxu0 0.0
        %2038 = vmatprep.subr.mxu0 0.0
        %2039 = vmatpush1.msra.mxu0 0.0
        %2040 = vmatprep.subr.mxu0 0.0
        %2041 = vmatpush1.msra.mxu0 0.0
        %2042 = vmatprep.subr.mxu0 0.0
        %2043 = vmatpush1.msra.mxu0 0.0
        %2044 = vmatprep.subr.mxu0 0.0
        %2045 = vmatpush1.msra.mxu0 0.0
        %2046 = vmatprep.subr.mxu0 0.0
        %2047 = vmatpush1.msra.mxu0 0.0
        %2048 = vmatprep.subr.mxu0 0.0
        %2049 = vmatpush1.msra.mxu0 0.0
        %2050 = vmatprep.subr.mxu0 0.0
        %2051 = vmatpush1.msra.mxu0 0.0
        %2052 = vmatprep.subr.mxu0 0.0
        %2053 = vmatpush1.msra.mxu0 0.0
        %2054 = vmatprep.subr.mxu0 0.0
        %2055 = vmatpush1.msra.mxu0 0.0
        %2056 = vmatprep.subr.mxu0 0.0
        %2057 = vmatpush1.msra.mxu0 0.0
        %2058 = vmatprep.subr.mxu0 0.0
        %2059 = vmatpush1.msra.mxu0 0.0
        %2060 = vmatprep.subr.mxu0 0.0
        %2061 = vmatpush1.msra.mxu0 0.0
        %2062 = vmatprep.subr.mxu0 0.0
        %2063 = vmatpush1.msra.mxu0 0.0
        %2064 = vmatprep.subr.mxu0 0.0
        %2065 = vmatpush1.msra.mxu0 0.0
        %2066 = vmatprep.subr.mxu0 0.0
        %2067 = vmatpush1.msra.mxu0 0.0
        %2068 = vmatprep.subr.mxu0 0.0
        %2069 = vmatpush1.msra.mxu0 0.0
        %2070 = vmatprep.subr.mxu0 0.0
        %2071 = vmatpush1.msra.mxu0 0.0
        %2072 = vmatprep.subr.mxu0 0.0
        %2073 = vmatpush1.msra.mxu0 0.0
        %2074 = vmatprep.subr.mxu0 0.0
        %2075 = vmatpush1.msra.mxu0 0.0
        %2076 = vmatprep.subr.mxu0 0.0
        %2077 = vmatpush1.msra.mxu0 0.0
        %2078 = vmatprep.subr.mxu0 0.0
        %2079 = vmatpush1.msra.mxu0 0.0
        %2080 = vmatprep.mubr.f32.mxu0 0.0
        %2081 = vmatmul.mubr.f32.gmra.mrb[0].mxu0 %v2008
        %v2082 = vpop.f32.mrb[0].mxu0
        %v2083 = vadd.f32 0.0, %v2082
        %v2084 = vpop.f32.mrb[0].mxu0
        %v2085 = vadd.f32 0.0, %v2084
        %2086 = vdwg.mxu0
        %v2087 = vadd.f32 %v1995, %v2083
        %v2088 = vadd.f32 %v1996, %v2085
        %v2089 = vsel %vm368, %v2087, 0.0
        %v2090 = vsel %vm368, %v2088, 0.0
        %v2091 = vadd.f32 %v2089, %v2090
        %2092 = vadd.xlane.f32.xlu0 %v2091
        %v2093 = vpop.xlane.xlu0 %2092
        %v2094 = vmul.f32 %v2093, %v1237
        %v2095 = vsub.f32 %v2087, %v2094
        %v2096 = vsub.f32 %v2088, %v2094
        %v2097 = vmul.f32 %v2095, %v2095
        %v2098 = vmul.f32 %v2096, %v2096
        %v2099 = vsel %vm368, %v2097, 0.0
        %v2100 = vsel %vm368, %v2098, 0.0
        %v2101 = vadd.f32 %v2099, %v2100
        %2102 = vadd.xlane.f32.xlu0 %v2101
        %v2103 = vpop.xlane.xlu0 %2102
        %v2104 = vmul.f32 %v2103, %v1237
        %v2105 = vld [vmem:[%s5] sm:$0xf]
        %v2106 = vadd.f32 %v2104, 1e-05
        %v2107 = vrsqrt.pop %v2106
        %v2108 = vmul.f32 %v2105, %v2107
        %2110 = vset.pattern.permute.xlu0 0
        %2111 = vperm.xlu0 %2110, %v2108
        %v2112 = vpop.permute.xlu0 %2111
        %v2114 = vmul.f32 %v2087, %v2112
        %v2115 = vmul.f32 %v2088, %v2112
        %v2116 = vld [vmem:[%s6] sm:$0xf]
        %v2117 = vmul.f32 %v2094, %v2108
        %v2118 = vsub.f32 %v2116, %v2117
        %2120 = vset.pattern.permute.xlu0 0
        %2121 = vperm.xlu0 %2120, %v2118
        %v2122 = vpop.permute.xlu0 %2121
        %v2124 = vadd.f32 %v2114, %v2122
        %v2125 = vadd.f32 %v2115, %v2122
        %v2128 = vcombine.low %v2124, %v2125
        %v2130 = vadd.f32 %v304, %v2128
        %v2131 = vmul.f32 %v2130, 0.1
        %v2132 = vmax.f32 %v2130, %v2131
        %2133 = vst [vmem:[%s298] sm:$0xff] %v2132
        %s2134 = sand.u32 %s203, 1
        %s2135 = scalar_lea.sflag [#allocation3], %s2134
        %s2136 = sand.u32 %s203, 1
        %s2137 = smul.addr %s2136, 8
        %s2138 = scalar_lea.vmem [#allocation2], %s2137
        // Predicated region
        $region53: #{tpu_custom_call.1} parent=51 // pred_check
          %p2139 = pneg %p213
        $region54: #{tpu_custom_call.1} parent=51 // pred_check_branch
          %2141 = sbr.rel (%p2139) target = $region56
        $region55: #{tpu_custom_call.1} parent=51 // pred_region
          %s2143 = ssub.s32 128, 128
          %2144 = vsyncadd %s2135, %s2143
          %s2145 = smul.addr %s22, 2
          %s2146 = smul.addr %s2145, 64
          %s2147 = scalar_lea.hbm %s8, %s2146
          %s2149 = sshll.u32 %s2138, 4
          %s2150 = int_to_ptr.vmem [resolvable:$true] %s2149
          %2152 = dma.vmem_to_hbm [thread:$0]  %s2150, 128, %s2147, %s2135
        $region56: #{tpu_custom_call.1} parent=51 // pred_fallthru
          _
      $region52: #{tpu_custom_call.1} parent=5 // pred_fallthru
        _
      %p2153 = scmp.le.s32.totalorder 2, %s17
      // Predicated region
      $region57: #{tpu_custom_call.1} parent=5 // pred_check
        %p2154 = pneg %p2153
      $region58: #{tpu_custom_call.1} parent=5 // pred_check_branch
        %2156 = sbr.rel (%p2154) target = $region60
      $region59: #{tpu_custom_call.1} parent=5 // pred_region
        %s2157 = ssub.s32 %s17, 2
        // Predicated region
        $region61: #{tpu_custom_call.1} parent=59 // pred_check
          %p2158 = pneg %p219
        $region62: #{tpu_custom_call.1} parent=59 // pred_check_branch
          %2160 = sbr.rel (%p2158) target = $region64
        $region63: #{tpu_custom_call.1} parent=59 // pred_region
          %s2161 = sand.u32 %s204, 1
          %s2162 = scalar_lea.sflag [#allocation3], %s2161
          %s2163 = sand.u32 %s204, 1
          %s2164 = smul.addr %s2163, 8
          %s2165 = scalar_lea.vmem [#allocation2], %s2164
          %2166 = dma.done %s2162, 128
        $region64: #{tpu_custom_call.1} parent=59 // pred_fallthru
          _
      $region60: #{tpu_custom_call.1} parent=5 // pred_fallthru
        _
    $region6: #{tpu_custom_call.1} parent=1 // loop_footer
      %s21 = sadd.s32 1, %s17
    $region7: #{tpu_custom_call.1} parent=1 // loop_footer_branch
      %16 = sbr.rel target = $region3
    $region8: #{tpu_custom_call.1} parent=1 // loop_exit
      _
    %2167 = vsyncpa [#allocation3], 1
    %s2168 = scalar_lea.sflag [#allocation3], 1
    %2169 = vsyncpa %s2168, 1

</llo_original>
